<compile_context>
chip_gen: v6e
topology: v6e:2x2x1
jax: 0.10.0
libtpu: 0.0.40
codegen_flags: <defaults>
</compile_context>

<pallas_src>
import jax
import jax.numpy as jnp
from jax.experimental import pallas as pl
from jax.experimental.pallas import tpu as pltpu


NEG_SLOPE = 0.01        # PyTorch nn.LeakyReLU default negative_slope
SUBLANE = 8             # f32 sublane granularity
_MIN_SPLIT_ROWS = 512   # only force a 2-step grid when each half has >= this many rows


def _round_up(n, m):
    return ((n + m - 1) // m) * m


def _cdiv(a, b):
    return (a + b - 1) // b


def _leaky_relu(h):
    return jnp.where(h > 0, h, NEG_SLOPE * h)


def label_predictor_kernel(x_ref,
                           w1_ref, b1_ref,
                           w2_ref, b2_ref,
                           w3_ref, b3_ref,
                           w4_ref, b4_ref,
                           o_ref):
    x = x_ref[...]  # f32 already; no redundant astype

    h = jnp.dot(x, w1_ref[...], preferred_element_type=jnp.float32) + b1_ref[...]
    h = _leaky_relu(h)

    h = jnp.dot(h, w2_ref[...], preferred_element_type=jnp.float32) + b2_ref[...]
    h = _leaky_relu(h)

    h = jnp.dot(h, w3_ref[...], preferred_element_type=jnp.float32) + b3_ref[...]
    h = _leaky_relu(h)

    logits = jnp.dot(h, w4_ref[...], preferred_element_type=jnp.float32) + b4_ref[...]

    # sigmoid = 1 / (1 + exp(-x)); exp issues on the EUP, exact divide (full precision).
    o_ref[...] = (1.0 / (1.0 + jnp.exp(-logits))).astype(o_ref.dtype)


def _choose_batch_tile(B, requested):
    bt = _round_up(max(int(requested), SUBLANE), SUBLANE)
    b_ceil = _round_up(B, SUBLANE)
    bt = min(bt, b_ceil)
    # v7x: guarantee >= 2 "parallel" grid steps when there is enough work to
    # split, so both TensorCores run (target 2-4 steps, not dozens).
    if b_ceil >= 2 * _MIN_SPLIT_ROWS and _cdiv(B, bt) < 2:
        bt = _round_up(_cdiv(b_ceil, 2), SUBLANE)
    return bt


def label_predictor(x, params, *, batch_tile=2048):
    """x: [B, input_dim]; params: dict of w1..w4 ([in,out]) and b1..b4 ([1,out])."""
    B, input_dim = x.shape
    hidden_dim = params["w1"].shape[1]
    num_labels = params["w4"].shape[1]

    bt = _choose_batch_tile(B, batch_tile)
    grid = (_cdiv(B, bt),)   # ragged last block handled by Pallas (row-wise compute)

    def const_spec(shape):
        # Constant block index across the grid -> Pallas keeps one resident copy
        # in VMEM instead of re-DMA'ing it every step.
        return pl.BlockSpec(shape, lambda i: (0, 0))

    flops = 2 * B * (input_dim * hidden_dim
                     + 2 * hidden_dim * hidden_dim
                     + hidden_dim * num_labels)
    bytes_accessed = 4 * (x.size + B * num_labels
                          + params["w1"].size + params["b1"].size
                          + params["w2"].size + params["b2"].size
                          + params["w3"].size + params["b3"].size
                          + params["w4"].size + params["b4"].size)
    cost = pl.CostEstimate(flops=flops,
                           transcendentals=B * num_labels,   # one exp per output element
                           bytes_accessed=bytes_accessed)

    return pl.pallas_call(
        label_predictor_kernel,
        out_shape=jax.ShapeDtypeStruct((B, num_labels), jnp.float32),
        grid_spec=pltpu.PrefetchScalarGridSpec(
            num_scalar_prefetch=0,
            grid=grid,
            in_specs=[
                pl.BlockSpec((bt, input_dim), lambda i: (i, 0)),
                const_spec((input_dim, hidden_dim)),
                const_spec((1, hidden_dim)),
                const_spec((hidden_dim, hidden_dim)),
                const_spec((1, hidden_dim)),
                const_spec((hidden_dim, hidden_dim)),
                const_spec((1, hidden_dim)),
                const_spec((hidden_dim, num_labels)),
                const_spec((1, num_labels)),
            ],
            # Narrow output: last block dim == full array dim (legal); no lane pad.
            out_specs=pl.BlockSpec((bt, num_labels), lambda i: (i, 0)),
        ),
        compiler_params=pltpu.CompilerParams(
            dimension_semantics=("parallel",)),
        cost_estimate=cost,
    )(x, params["w1"], params["b1"], params["w2"], params["b2"],
      params["w3"], params["b3"], params["w4"], params["b4"])


def init_params(key, input_dim, num_labels, hidden_dim):
    """Deterministic synthetic parameters (shapes match the nn.Linear layers)."""
    ks = jax.random.split(key, 8)

    def lin(kw, kb, fan_in, fan_out):
        # Kaiming-uniform-ish init, stored as [in, out] (transpose of PyTorch).
        bound = 1.0 / jnp.sqrt(fan_in)
        w = jax.random.uniform(kw, (fan_in, fan_out), jnp.float32, -bound, bound)
        b = jax.random.uniform(kb, (1, fan_out), jnp.float32, -bound, bound)
        return w, b

    w1, b1 = lin(ks[0], ks[1], input_dim, hidden_dim)
    w2, b2 = lin(ks[2], ks[3], hidden_dim, hidden_dim)
    w3, b3 = lin(ks[4], ks[5], hidden_dim, hidden_dim)
    w4, b4 = lin(ks[6], ks[7], hidden_dim, num_labels)
    return dict(w1=w1, b1=b1, w2=w2, b2=b2, w3=w3, b3=b3, w4=w4, b4=b4)


def reference_forward(x, p):
    h = _leaky_relu(x @ p["w1"] + p["b1"])
    h = _leaky_relu(h @ p["w2"] + p["b2"])
    h = _leaky_relu(h @ p["w3"] + p["b3"])
    return jax.nn.sigmoid(h @ p["w4"] + p["b4"])


if __name__ == "__main__":
    input_dim, hidden_dim, num_labels = 16, 32, 4

    key = jax.random.PRNGKey(0)
    kx, kp = jax.random.split(key)
    params = init_params(kp, input_dim, num_labels, hidden_dim)

    # Case 1: single large tile (B <= batch_tile), narrow num_labels-wide output.
    x1 = jax.random.normal(kx, (256, input_dim), jnp.float32)
    out1 = jax.block_until_ready(label_predictor(x1, params))
    ref1 = reference_forward(x1, params)
    assert out1.shape == (256, num_labels)
    assert jnp.allclose(out1, ref1, atol=1e-4, rtol=1e-4), "mismatch vs JAX reference (case 1)"

    # Case 2: ragged batch large enough to force a 2-step grid (both v7x TCs).
    x2 = jax.random.normal(jax.random.PRNGKey(1), (1050, input_dim), jnp.float32)
    out2 = jax.block_until_ready(label_predictor(x2, params))
    ref2 = reference_forward(x2, params)
    assert out2.shape == (1050, num_labels)
    assert jnp.allclose(out2, ref2, atol=1e-4, rtol=1e-4), "mismatch vs JAX reference (case 2)"

    # Case 3: tiny ragged batch -> single partial block, no wrapper pad/slice.
    x3 = x1[:10]
    out3 = jax.block_until_ready(label_predictor(x3, params))
    ref3 = reference_forward(x3, params)
    assert out3.shape == (10, num_labels)
    assert jnp.allclose(out3, ref3, atol=1e-4, rtol=1e-4), "mismatch vs JAX reference (case 3)"

    print("KERNEL_OK")
</pallas_src>

<mosaic_0001>
module attributes {stable_mosaic.version = 11 : i64} {
  func.func @label_predictor_kernel(%arg0: i32, %arg1: memref<256x16xf32, #tpu.memory_space<vmem>>, %arg2: memref<16x32xf32, #tpu.memory_space<vmem>>, %arg3: memref<1x32xf32, #tpu.memory_space<vmem>>, %arg4: memref<32x32xf32, #tpu.memory_space<vmem>>, %arg5: memref<1x32xf32, #tpu.memory_space<vmem>>, %arg6: memref<32x32xf32, #tpu.memory_space<vmem>>, %arg7: memref<1x32xf32, #tpu.memory_space<vmem>>, %arg8: memref<32x4xf32, #tpu.memory_space<vmem>>, %arg9: memref<1x4xf32, #tpu.memory_space<vmem>>, %arg10: memref<256x4xf32, #tpu.memory_space<vmem>>) attributes {dimension_semantics = [#tpu.dimension_semantics<parallel>], iteration_bounds = array<i64: 1>, scalar_prefetch = 0 : i64, scratch_operands = 0 : i64, tpu.core_type = #tpu.core_type<tc>, window_params = [{transform_indices = @transform_0, window_bounds = array<i64: 256, 16>}, {pipeline_mode = #tpu.pipeline_mode<synchronous>, transform_indices = @transform_1, window_bounds = array<i64: 16, 32>}, {pipeline_mode = #tpu.pipeline_mode<synchronous>, transform_indices = @transform_2, window_bounds = array<i64: 1, 32>}, {pipeline_mode = #tpu.pipeline_mode<synchronous>, transform_indices = @transform_3, window_bounds = array<i64: 32, 32>}, {pipeline_mode = #tpu.pipeline_mode<synchronous>, transform_indices = @transform_4, window_bounds = array<i64: 1, 32>}, {pipeline_mode = #tpu.pipeline_mode<synchronous>, transform_indices = @transform_5, window_bounds = array<i64: 32, 32>}, {pipeline_mode = #tpu.pipeline_mode<synchronous>, transform_indices = @transform_6, window_bounds = array<i64: 1, 32>}, {pipeline_mode = #tpu.pipeline_mode<synchronous>, transform_indices = @transform_7, window_bounds = array<i64: 32, 4>}, {pipeline_mode = #tpu.pipeline_mode<synchronous>, transform_indices = @transform_8, window_bounds = array<i64: 1, 4>}, {transform_indices = @transform_9, window_bounds = array<i64: 256, 4>}]} {
    %c0 = arith.constant 0 : index
    %c0_0 = arith.constant 0 : index
    %0 = vector.load %arg1[%c0, %c0_0] : memref<256x16xf32, #tpu.memory_space<vmem>>, vector<256x16xf32>
    %c0_1 = arith.constant 0 : index
    %c0_2 = arith.constant 0 : index
    %1 = vector.load %arg2[%c0_1, %c0_2] : memref<16x32xf32, #tpu.memory_space<vmem>>, vector<16x32xf32>
    %cst = arith.constant dense<0.000000e+00> : vector<256x32xf32>
    %2 = tpu.matmul %0, %1, %cst {dimension_numbers = #tpu.dot_dimension_numbers<[1], [0], [0], [1], [0, 0, 1, 1], [], []>} : vector<256x16xf32>, vector<16x32xf32>, vector<256x32xf32> -> vector<256x32xf32>
    %c0_3 = arith.constant 0 : index
    %c0_4 = arith.constant 0 : index
    %3 = vector.load %arg3[%c0_3, %c0_4] : memref<1x32xf32, #tpu.memory_space<vmem>>, vector<1x32xf32>
    %4 = vector.broadcast %3 : vector<1x32xf32> to vector<256x32xf32>
    %5 = arith.addf %2, %4 : vector<256x32xf32>
    %cst_5 = arith.constant 0.000000e+00 : f32
    %6 = vector.broadcast %cst_5 : f32 to vector<256x32xf32>
    %7 = arith.cmpf ogt, %5, %6 : vector<256x32xf32>
    %cst_6 = arith.constant 0.00999999977 : f32
    %8 = vector.broadcast %cst_6 : f32 to vector<256x32xf32>
    %9 = arith.mulf %8, %5 : vector<256x32xf32>
    %10 = arith.select %7, %5, %9 : vector<256x32xi1>, vector<256x32xf32>
    %c0_7 = arith.constant 0 : index
    %c0_8 = arith.constant 0 : index
    %11 = vector.load %arg4[%c0_7, %c0_8] : memref<32x32xf32, #tpu.memory_space<vmem>>, vector<32x32xf32>
    %cst_9 = arith.constant dense<0.000000e+00> : vector<256x32xf32>
    %12 = tpu.matmul %10, %11, %cst_9 {dimension_numbers = #tpu.dot_dimension_numbers<[1], [0], [0], [1], [0, 0, 1, 1], [], []>} : vector<256x32xf32>, vector<32x32xf32>, vector<256x32xf32> -> vector<256x32xf32>
    %c0_10 = arith.constant 0 : index
    %c0_11 = arith.constant 0 : index
    %13 = vector.load %arg5[%c0_10, %c0_11] : memref<1x32xf32, #tpu.memory_space<vmem>>, vector<1x32xf32>
    %14 = vector.broadcast %13 : vector<1x32xf32> to vector<256x32xf32>
    %15 = arith.addf %12, %14 : vector<256x32xf32>
    %cst_12 = arith.constant 0.000000e+00 : f32
    %16 = vector.broadcast %cst_12 : f32 to vector<256x32xf32>
    %17 = arith.cmpf ogt, %15, %16 : vector<256x32xf32>
    %cst_13 = arith.constant 0.00999999977 : f32
    %18 = vector.broadcast %cst_13 : f32 to vector<256x32xf32>
    %19 = arith.mulf %18, %15 : vector<256x32xf32>
    %20 = arith.select %17, %15, %19 : vector<256x32xi1>, vector<256x32xf32>
    %c0_14 = arith.constant 0 : index
    %c0_15 = arith.constant 0 : index
    %21 = vector.load %arg6[%c0_14, %c0_15] : memref<32x32xf32, #tpu.memory_space<vmem>>, vector<32x32xf32>
    %cst_16 = arith.constant dense<0.000000e+00> : vector<256x32xf32>
    %22 = tpu.matmul %20, %21, %cst_16 {dimension_numbers = #tpu.dot_dimension_numbers<[1], [0], [0], [1], [0, 0, 1, 1], [], []>} : vector<256x32xf32>, vector<32x32xf32>, vector<256x32xf32> -> vector<256x32xf32>
    %c0_17 = arith.constant 0 : index
    %c0_18 = arith.constant 0 : index
    %23 = vector.load %arg7[%c0_17, %c0_18] : memref<1x32xf32, #tpu.memory_space<vmem>>, vector<1x32xf32>
    %24 = vector.broadcast %23 : vector<1x32xf32> to vector<256x32xf32>
    %25 = arith.addf %22, %24 : vector<256x32xf32>
    %cst_19 = arith.constant 0.000000e+00 : f32
    %26 = vector.broadcast %cst_19 : f32 to vector<256x32xf32>
    %27 = arith.cmpf ogt, %25, %26 : vector<256x32xf32>
    %cst_20 = arith.constant 0.00999999977 : f32
    %28 = vector.broadcast %cst_20 : f32 to vector<256x32xf32>
    %29 = arith.mulf %28, %25 : vector<256x32xf32>
    %30 = arith.select %27, %25, %29 : vector<256x32xi1>, vector<256x32xf32>
    %c0_21 = arith.constant 0 : index
    %c0_22 = arith.constant 0 : index
    %31 = vector.load %arg8[%c0_21, %c0_22] : memref<32x4xf32, #tpu.memory_space<vmem>>, vector<32x4xf32>
    %cst_23 = arith.constant dense<0.000000e+00> : vector<256x4xf32>
    %32 = tpu.matmul %30, %31, %cst_23 {dimension_numbers = #tpu.dot_dimension_numbers<[1], [0], [0], [1], [0, 0, 1, 1], [], []>} : vector<256x32xf32>, vector<32x4xf32>, vector<256x4xf32> -> vector<256x4xf32>
    %c0_24 = arith.constant 0 : index
    %c0_25 = arith.constant 0 : index
    %33 = vector.load %arg9[%c0_24, %c0_25] : memref<1x4xf32, #tpu.memory_space<vmem>>, vector<1x4xf32>
    %34 = vector.broadcast %33 : vector<1x4xf32> to vector<256x4xf32>
    %35 = arith.addf %32, %34 : vector<256x4xf32>
    %cst_26 = arith.constant 0.000000e+00 : f32
    %36 = vector.broadcast %cst_26 : f32 to vector<256x4xf32>
    %37 = arith.subf %36, %35 : vector<256x4xf32>
    %38 = math.exp %37 : vector<256x4xf32>
    %cst_27 = arith.constant 1.000000e+00 : f32
    %39 = vector.broadcast %cst_27 : f32 to vector<256x4xf32>
    %40 = arith.addf %39, %38 : vector<256x4xf32>
    %cst_28 = arith.constant 1.000000e+00 : f32
    %41 = vector.broadcast %cst_28 : f32 to vector<256x4xf32>
    %42 = arith.divf %41, %40 : vector<256x4xf32>
    %c0_29 = arith.constant 0 : index
    %c0_30 = arith.constant 0 : index
    %43 = vector.load %arg10[%c0_29, %c0_30] : memref<256x4xf32, #tpu.memory_space<vmem>>, vector<256x4xf32>
    tpu.vector_store %arg10[%c0_29, %c0_30], %42 {strides = array<i32>} : memref<256x4xf32, #tpu.memory_space<vmem>>, vector<256x4xf32>,
    return
  }
  func.func @transform_0(%arg0: i32) -> (i32, i32) {
    %c0_i32 = arith.constant 0 : i32
    %c0_i32_0 = arith.constant 0 : i32
    return %arg0, %c0_i32 : i32, i32
  }
  func.func @transform_1(%arg0: i32) -> (i32, i32) {
    %c0_i32 = arith.constant 0 : i32
    %c0_i32_0 = arith.constant 0 : i32
    %c0_i32_1 = arith.constant 0 : i32
    return %c0_i32, %c0_i32_0 : i32, i32
  }
  func.func @transform_2(%arg0: i32) -> (i32, i32) {
    %c0_i32 = arith.constant 0 : i32
    %c0_i32_0 = arith.constant 0 : i32
    %c0_i32_1 = arith.constant 0 : i32
    return %c0_i32, %c0_i32_0 : i32, i32
  }
  func.func @transform_3(%arg0: i32) -> (i32, i32) {
    %c0_i32 = arith.constant 0 : i32
    %c0_i32_0 = arith.constant 0 : i32
    %c0_i32_1 = arith.constant 0 : i32
    return %c0_i32, %c0_i32_0 : i32, i32
  }
  func.func @transform_4(%arg0: i32) -> (i32, i32) {
    %c0_i32 = arith.constant 0 : i32
    %c0_i32_0 = arith.constant 0 : i32
    %c0_i32_1 = arith.constant 0 : i32
    return %c0_i32, %c0_i32_0 : i32, i32
  }
  func.func @transform_5(%arg0: i32) -> (i32, i32) {
    %c0_i32 = arith.constant 0 : i32
    %c0_i32_0 = arith.constant 0 : i32
    %c0_i32_1 = arith.constant 0 : i32
    return %c0_i32, %c0_i32_0 : i32, i32
  }
  func.func @transform_6(%arg0: i32) -> (i32, i32) {
    %c0_i32 = arith.constant 0 : i32
    %c0_i32_0 = arith.constant 0 : i32
    %c0_i32_1 = arith.constant 0 : i32
    return %c0_i32, %c0_i32_0 : i32, i32
  }
  func.func @transform_7(%arg0: i32) -> (i32, i32) {
    %c0_i32 = arith.constant 0 : i32
    %c0_i32_0 = arith.constant 0 : i32
    %c0_i32_1 = arith.constant 0 : i32
    return %c0_i32, %c0_i32_0 : i32, i32
  }
  func.func @transform_8(%arg0: i32) -> (i32, i32) {
    %c0_i32 = arith.constant 0 : i32
    %c0_i32_0 = arith.constant 0 : i32
    %c0_i32_1 = arith.constant 0 : i32
    return %c0_i32, %c0_i32_0 : i32, i32
  }
  func.func @transform_9(%arg0: i32) -> (i32, i32) {
    %c0_i32 = arith.constant 0 : i32
    %c0_i32_0 = arith.constant 0 : i32
    return %arg0, %c0_i32 : i32, i32
  }
}

</mosaic_0001>

<llo_original>
// kernel: tpu_custom_call.1
$region0: #{tpu_custom_call.1}
  #allocation0 [shape = 'u32[]', space=smem, size = 0x4, offset = 0x4, fixed_abs, tag = 'smem constant byte address 0x4 - core index']
  #allocation1 [shape = 'u32[144,128]{1,0:T(1,128)}', space=vmem, size = 0x12000, scoped, tag = 'internal scratch']
  %s0 = inlined_call_operand.vmem [shape: f32[256,16], index: 0, kind: input, shape index: {}]
  %s1 = inlined_call_operand.vmem [shape: f32[16,32], index: 1, kind: input, shape index: {}]
  %s2 = inlined_call_operand.vmem [shape: f32[1,32], index: 2, kind: input, shape index: {}]
  %s3 = inlined_call_operand.vmem [shape: f32[32,32], index: 3, kind: input, shape index: {}]
  %s4 = inlined_call_operand.vmem [shape: f32[1,32], index: 4, kind: input, shape index: {}]
  %s5 = inlined_call_operand.vmem [shape: f32[32,32], index: 5, kind: input, shape index: {}]
  %s6 = inlined_call_operand.vmem [shape: f32[1,32], index: 6, kind: input, shape index: {}]
  %s7 = inlined_call_operand.vmem [shape: f32[32,4], index: 7, kind: input, shape index: {}]
  %s8 = inlined_call_operand.vmem [shape: f32[1,4], index: 8, kind: input, shape index: {}]
  %s9 = inlined_call_operand.vmem [shape: f32[256,4], index: 9, kind: output, shape index: {}]
  %s10 = sld [smem:[#allocation0]]
  $region46: #{tpu_custom_call.1} parent=0
    _
  %s12 = ssub.s32 1, %s10
  %s13 = scalar_select 0, %s12, %s10
  // Predicated region
  $region2: #{tpu_custom_call.1} parent=0 // pred_check
    _
  $region3: #{tpu_custom_call.1} parent=0 // pred_check_branch
    %15 = sbr.rel (0) target = $region5
  $region4: #{tpu_custom_call.1} parent=0 // pred_region
    _
  $region5: #{tpu_custom_call.1} parent=0 // pred_fallthru
    _
  // Predicated region
  $region6: #{tpu_custom_call.1} parent=0 // pred_check
    _
  $region7: #{tpu_custom_call.1} parent=0 // pred_check_branch
    %17 = sbr.rel (0) target = $region9
  $region8: #{tpu_custom_call.1} parent=0 // pred_region
    _
  $region9: #{tpu_custom_call.1} parent=0 // pred_fallthru
    _
  // Predicated region
  $region10: #{tpu_custom_call.1} parent=0 // pred_check
    _
  $region11: #{tpu_custom_call.1} parent=0 // pred_check_branch
    %19 = sbr.rel (0) target = $region13
  $region12: #{tpu_custom_call.1} parent=0 // pred_region
    _
  $region13: #{tpu_custom_call.1} parent=0 // pred_fallthru
    _
  // Predicated region
  $region14: #{tpu_custom_call.1} parent=0 // pred_check
    _
  $region15: #{tpu_custom_call.1} parent=0 // pred_check_branch
    %21 = sbr.rel (0) target = $region17
  $region16: #{tpu_custom_call.1} parent=0 // pred_region
    _
  $region17: #{tpu_custom_call.1} parent=0 // pred_fallthru
    _
  // Predicated region
  $region18: #{tpu_custom_call.1} parent=0 // pred_check
    _
  $region19: #{tpu_custom_call.1} parent=0 // pred_check_branch
    %23 = sbr.rel (0) target = $region21
  $region20: #{tpu_custom_call.1} parent=0 // pred_region
    _
  $region21: #{tpu_custom_call.1} parent=0 // pred_fallthru
    _
  // Predicated region
  $region22: #{tpu_custom_call.1} parent=0 // pred_check
    _
  $region23: #{tpu_custom_call.1} parent=0 // pred_check_branch
    %25 = sbr.rel (0) target = $region25
  $region24: #{tpu_custom_call.1} parent=0 // pred_region
    _
  $region25: #{tpu_custom_call.1} parent=0 // pred_fallthru
    _
  // Predicated region
  $region26: #{tpu_custom_call.1} parent=0 // pred_check
    _
  $region27: #{tpu_custom_call.1} parent=0 // pred_check_branch
    %27 = sbr.rel (0) target = $region29
  $region28: #{tpu_custom_call.1} parent=0 // pred_region
    _
  $region29: #{tpu_custom_call.1} parent=0 // pred_fallthru
    _
  // Predicated region
  $region30: #{tpu_custom_call.1} parent=0 // pred_check
    _
  $region31: #{tpu_custom_call.1} parent=0 // pred_check_branch
    %29 = sbr.rel (0) target = $region33
  $region32: #{tpu_custom_call.1} parent=0 // pred_region
    _
  $region33: #{tpu_custom_call.1} parent=0 // pred_fallthru
    _
  // Predicated region
  $region34: #{tpu_custom_call.1} parent=0 // pred_check
    _
  $region35: #{tpu_custom_call.1} parent=0 // pred_check_branch
    %31 = sbr.rel (0) target = $region37
  $region36: #{tpu_custom_call.1} parent=0 // pred_region
    _
  $region37: #{tpu_custom_call.1} parent=0 // pred_fallthru
    _
  %v32 = vld [vmem:[%s0] sm:$0xff]
  %v33 = vld [vmem:[%s0 + $0x8] sm:$0xff]
  %v34 = vld [vmem:[%s0 + $0x10] sm:$0xff]
  %v35 = vld [vmem:[%s0 + $0x18] sm:$0xff]
  %v36 = vld [vmem:[%s0 + $0x20] sm:$0xff]
  %v37 = vld [vmem:[%s0 + $0x28] sm:$0xff]
  %v38 = vld [vmem:[%s0 + $0x30] sm:$0xff]
  %v39 = vld [vmem:[%s0 + $0x38] sm:$0xff]
  %v40 = vld [vmem:[%s0 + $0x40] sm:$0xff]
  %v41 = vld [vmem:[%s0 + $0x48] sm:$0xff]
  %v42 = vld [vmem:[%s0 + $0x50] sm:$0xff]
  %v43 = vld [vmem:[%s0 + $0x58] sm:$0xff]
  %v44 = vld [vmem:[%s0 + $0x60] sm:$0xff]
  %v45 = vld [vmem:[%s0 + $0x68] sm:$0xff]
  %v46 = vld [vmem:[%s0 + $0x70] sm:$0xff]
  %v47 = vld [vmem:[%s0 + $0x78] sm:$0xff]
  %v48 = vld [vmem:[%s0 + $0x80] sm:$0xff]
  %v49 = vld [vmem:[%s0 + $0x88] sm:$0xff]
  %v50 = vld [vmem:[%s0 + $0x90] sm:$0xff]
  %v51 = vld [vmem:[%s0 + $0x98] sm:$0xff]
  %v52 = vld [vmem:[%s0 + $0xa0] sm:$0xff]
  %v53 = vld [vmem:[%s0 + $0xa8] sm:$0xff]
  %v54 = vld [vmem:[%s0 + $0xb0] sm:$0xff]
  %v55 = vld [vmem:[%s0 + $0xb8] sm:$0xff]
  %v56 = vld [vmem:[%s0 + $0xc0] sm:$0xff]
  %v57 = vld [vmem:[%s0 + $0xc8] sm:$0xff]
  %v58 = vld [vmem:[%s0 + $0xd0] sm:$0xff]
  %v59 = vld [vmem:[%s0 + $0xd8] sm:$0xff]
  %v60 = vld [vmem:[%s0 + $0xe0] sm:$0xff]
  %v61 = vld [vmem:[%s0 + $0xe8] sm:$0xff]
  %v62 = vld [vmem:[%s0 + $0xf0] sm:$0xff]
  %v63 = vld [vmem:[%s0 + $0xf8] sm:$0xff]
  %v64 = vld [vmem:[%s1] sm:$0xff]
  %v65 = vld [vmem:[%s1 + $0x8] sm:$0xff]
  %v66 = vld [vmem:[%s2] sm:$0x1]
  %v68 = vlaneseq
  %v69 = vshrl.u32 %v68, 7
  %v70 = vsub.s32 0, %v69
  %v71 = vrot.slane %v66, %v70
  %vm73 = vcmask 130048
  %v75 = vsel %vm73, %v32, 0
  %v78 = vsel %vm73, %v33, 0
  %v81 = vsel %vm73, %v34, 0
  %v84 = vsel %vm73, %v35, 0
  %v87 = vsel %vm73, %v36, 0
  %v90 = vsel %vm73, %v37, 0
  %v93 = vsel %vm73, %v38, 0
  %v96 = vsel %vm73, %v39, 0
  %v99 = vsel %vm73, %v40, 0
  %v102 = vsel %vm73, %v41, 0
  %v105 = vsel %vm73, %v42, 0
  %v108 = vsel %vm73, %v43, 0
  %v111 = vsel %vm73, %v44, 0
  %v114 = vsel %vm73, %v45, 0
  %v117 = vsel %vm73, %v46, 0
  %v120 = vsel %vm73, %v47, 0
  %v123 = vsel %vm73, %v48, 0
  %v126 = vsel %vm73, %v49, 0
  %v129 = vsel %vm73, %v50, 0
  %v132 = vsel %vm73, %v51, 0
  %v135 = vsel %vm73, %v52, 0
  %v138 = vsel %vm73, %v53, 0
  %v141 = vsel %vm73, %v54, 0
  %v144 = vsel %vm73, %v55, 0
  %v147 = vsel %vm73, %v56, 0
  %v150 = vsel %vm73, %v57, 0
  %v153 = vsel %vm73, %v58, 0
  %v156 = vsel %vm73, %v59, 0
  %v159 = vsel %vm73, %v60, 0
  %v162 = vsel %vm73, %v61, 0
  %v165 = vsel %vm73, %v62, 0
  %v168 = vsel %vm73, %v63, 0
  %170 = vmatprep.subr.mxu0 0.0
  %171 = vmatpush1.msra.mxu0 0.0
  %172 = vmatprep.subr.mxu0 0.0
  %173 = vmatpush1.msra.mxu0 0.0
  %174 = vmatprep.subr.mxu0 0.0
  %175 = vmatpush1.msra.mxu0 0.0
  %176 = vmatprep.subr.mxu0 0.0
  %177 = vmatpush1.msra.mxu0 0.0
  %178 = vmatprep.subr.mxu0 0.0
  %179 = vmatpush1.msra.mxu0 0.0
  %180 = vmatprep.subr.mxu0 0.0
  %181 = vmatpush1.msra.mxu0 0.0
  %182 = vmatprep.subr.mxu0 0.0
  %183 = vmatpush1.msra.mxu0 0.0
  %184 = vmatprep.subr.mxu0 0.0
  %185 = vmatpush1.msra.mxu0 0.0
  %186 = vmatprep.subr.mxu0 0.0
  %187 = vmatpush1.msra.mxu0 0.0
  %188 = vmatprep.subr.mxu0 0.0
  %189 = vmatpush1.msra.mxu0 0.0
  %190 = vmatprep.subr.mxu0 0.0
  %191 = vmatpush1.msra.mxu0 0.0
  %192 = vmatprep.subr.mxu0 0.0
  %193 = vmatpush1.msra.mxu0 0.0
  %194 = vmatprep.subr.mxu0 0.0
  %195 = vmatpush1.msra.mxu0 0.0
  %196 = vmatprep.subr.mxu0 0.0
  %197 = vmatpush1.msra.mxu0 0.0
  %198 = vmatprep.subr.mxu0 0.0
  %199 = vmatpush1.msra.mxu0 %v65
  %200 = vmatprep.subr.mxu0 0.0
  %201 = vmatpush1.msra.mxu0 %v64
  %202 = vmatprep.subr.mxu0 0.0
  %203 = vmatpush2.msra.mxu0 0.0
  %204 = vmatprep.subr.mxu0 0.0
  %205 = vmatpush2.msra.mxu0 0.0
  %206 = vmatprep.subr.mxu0 0.0
  %207 = vmatpush2.msra.mxu0 0.0
  %208 = vmatprep.subr.mxu0 0.0
  %209 = vmatpush2.msra.mxu0 0.0
  %210 = vmatprep.subr.mxu0 0.0
  %211 = vmatpush2.msra.mxu0 0.0
  %212 = vmatprep.subr.mxu0 0.0
  %213 = vmatpush2.msra.mxu0 0.0
  %214 = vmatprep.subr.mxu0 0.0
  %215 = vmatpush2.msra.mxu0 0.0
  %216 = vmatprep.subr.mxu0 0.0
  %217 = vmatpush2.msra.mxu0 0.0
  %218 = vmatprep.subr.mxu0 0.0
  %219 = vmatpush2.msra.mxu0 0.0
  %220 = vmatprep.subr.mxu0 0.0
  %221 = vmatpush2.msra.mxu0 0.0
  %222 = vmatprep.subr.mxu0 0.0
  %223 = vmatpush2.msra.mxu0 0.0
  %224 = vmatprep.subr.mxu0 0.0
  %225 = vmatpush2.msra.mxu0 0.0
  %226 = vmatprep.subr.mxu0 0.0
  %227 = vmatpush2.msra.mxu0 0.0
  %228 = vmatprep.subr.mxu0 0.0
  %229 = vmatpush2.msra.mxu0 0.0
  %230 = vmatprep.subr.mxu0 0.0
  %231 = vmatpush2.msra.mxu0 0.0
  %232 = vmatprep.subr.mxu0 0.0
  %233 = vmatpush2.msra.mxu0 0.0
  %234 = vmatprep.mubr.f32.mxu0 0.0
  %235 = vmatmul.mubr.f32.gmra.mxu0 %v75
  %v236 = vpop.f32.mrf.mxu0
  %v237 = vadd.f32 %v71, %v236
  %v238 = vpop.f32.mrf.mxu0
  %239 = vmatprep.mubr.f32.mxu0 0.0
  %240 = vmatmul.mubr.f32.gmra.mxu0 %v78
  %v241 = vpop.f32.mrf.mxu0
  %v242 = vadd.f32 %v71, %v241
  %v243 = vpop.f32.mrf.mxu0
  %244 = vmatprep.mubr.f32.mxu0 0.0
  %245 = vmatmul.mubr.f32.gmra.mxu0 %v81
  %v246 = vpop.f32.mrf.mxu0
  %v247 = vadd.f32 %v71, %v246
  %v248 = vpop.f32.mrf.mxu0
  %249 = vmatprep.mubr.f32.mxu0 0.0
  %250 = vmatmul.mubr.f32.gmra.mxu0 %v84
  %v251 = vpop.f32.mrf.mxu0
  %v252 = vadd.f32 %v71, %v251
  %v253 = vpop.f32.mrf.mxu0
  %254 = vmatprep.mubr.f32.mxu0 0.0
  %255 = vmatmul.mubr.f32.gmra.mxu0 %v87
  %v256 = vpop.f32.mrf.mxu0
  %v257 = vadd.f32 %v71, %v256
  %v258 = vpop.f32.mrf.mxu0
  %259 = vmatprep.mubr.f32.mxu0 0.0
  %260 = vmatmul.mubr.f32.gmra.mxu0 %v90
  %v261 = vpop.f32.mrf.mxu0
  %v262 = vadd.f32 %v71, %v261
  %v263 = vpop.f32.mrf.mxu0
  %264 = vmatprep.mubr.f32.mxu0 0.0
  %265 = vmatmul.mubr.f32.gmra.mxu0 %v93
  %v266 = vpop.f32.mrf.mxu0
  %v267 = vadd.f32 %v71, %v266
  %v268 = vpop.f32.mrf.mxu0
  %269 = vmatprep.mubr.f32.mxu0 0.0
  %270 = vmatmul.mubr.f32.gmra.mxu0 %v96
  %v271 = vpop.f32.mrf.mxu0
  %v272 = vadd.f32 %v71, %v271
  %v273 = vpop.f32.mrf.mxu0
  %274 = vmatprep.mubr.f32.mxu0 0.0
  %275 = vmatmul.mubr.f32.gmra.mxu0 %v99
  %v276 = vpop.f32.mrf.mxu0
  %v277 = vadd.f32 %v71, %v276
  %v278 = vpop.f32.mrf.mxu0
  %279 = vmatprep.mubr.f32.mxu0 0.0
  %280 = vmatmul.mubr.f32.gmra.mxu0 %v102
  %v281 = vpop.f32.mrf.mxu0
  %v282 = vadd.f32 %v71, %v281
  %v283 = vpop.f32.mrf.mxu0
  %284 = vmatprep.mubr.f32.mxu0 0.0
  %285 = vmatmul.mubr.f32.gmra.mxu0 %v105
  %v286 = vpop.f32.mrf.mxu0
  %v287 = vadd.f32 %v71, %v286
  %v288 = vpop.f32.mrf.mxu0
  %289 = vmatprep.mubr.f32.mxu0 0.0
  %290 = vmatmul.mubr.f32.gmra.mxu0 %v108
  %v291 = vpop.f32.mrf.mxu0
  %v292 = vadd.f32 %v71, %v291
  %v293 = vpop.f32.mrf.mxu0
  %294 = vmatprep.mubr.f32.mxu0 0.0
  %295 = vmatmul.mubr.f32.gmra.mxu0 %v111
  %v296 = vpop.f32.mrf.mxu0
  %v297 = vadd.f32 %v71, %v296
  %v298 = vpop.f32.mrf.mxu0
  %299 = vmatprep.mubr.f32.mxu0 0.0
  %300 = vmatmul.mubr.f32.gmra.mxu0 %v114
  %v301 = vpop.f32.mrf.mxu0
  %v302 = vadd.f32 %v71, %v301
  %v303 = vpop.f32.mrf.mxu0
  %304 = vmatprep.mubr.f32.mxu0 0.0
  %305 = vmatmul.mubr.f32.gmra.mxu0 %v117
  %v306 = vpop.f32.mrf.mxu0
  %v307 = vadd.f32 %v71, %v306
  %v308 = vpop.f32.mrf.mxu0
  %309 = vmatprep.mubr.f32.mxu0 0.0
  %310 = vmatmul.mubr.f32.gmra.mxu0 %v120
  %v311 = vpop.f32.mrf.mxu0
  %v312 = vadd.f32 %v71, %v311
  %v313 = vpop.f32.mrf.mxu0
  %314 = vmatprep.mubr.f32.mxu0 0.0
  %315 = vmatmul.mubr.f32.gmra.mxu0 %v123
  %v316 = vpop.f32.mrf.mxu0
  %v317 = vadd.f32 %v71, %v316
  %v318 = vpop.f32.mrf.mxu0
  %319 = vmatprep.mubr.f32.mxu0 0.0
  %320 = vmatmul.mubr.f32.gmra.mxu0 %v126
  %v321 = vpop.f32.mrf.mxu0
  %v322 = vadd.f32 %v71, %v321
  %v323 = vpop.f32.mrf.mxu0
  %324 = vmatprep.mubr.f32.mxu0 0.0
  %325 = vmatmul.mubr.f32.gmra.mxu0 %v129
  %v326 = vpop.f32.mrf.mxu0
  %v327 = vadd.f32 %v71, %v326
  %v328 = vpop.f32.mrf.mxu0
  %329 = vmatprep.mubr.f32.mxu0 0.0
  %330 = vmatmul.mubr.f32.gmra.mxu0 %v132
  %v331 = vpop.f32.mrf.mxu0
  %v332 = vadd.f32 %v71, %v331
  %v333 = vpop.f32.mrf.mxu0
  %334 = vmatprep.mubr.f32.mxu0 0.0
  %335 = vmatmul.mubr.f32.gmra.mxu0 %v135
  %v336 = vpop.f32.mrf.mxu0
  %v337 = vadd.f32 %v71, %v336
  %v338 = vpop.f32.mrf.mxu0
  %339 = vmatprep.mubr.f32.mxu0 0.0
  %340 = vmatmul.mubr.f32.gmra.mxu0 %v138
  %v341 = vpop.f32.mrf.mxu0
  %v342 = vadd.f32 %v71, %v341
  %v343 = vpop.f32.mrf.mxu0
  %344 = vmatprep.mubr.f32.mxu0 0.0
  %345 = vmatmul.mubr.f32.gmra.mxu0 %v141
  %v346 = vpop.f32.mrf.mxu0
  %v347 = vadd.f32 %v71, %v346
  %v348 = vpop.f32.mrf.mxu0
  %349 = vmatprep.mubr.f32.mxu0 0.0
  %350 = vmatmul.mubr.f32.gmra.mxu0 %v144
  %v351 = vpop.f32.mrf.mxu0
  %v352 = vadd.f32 %v71, %v351
  %v353 = vpop.f32.mrf.mxu0
  %354 = vmatprep.mubr.f32.mxu0 0.0
  %355 = vmatmul.mubr.f32.gmra.mxu0 %v147
  %v356 = vpop.f32.mrf.mxu0
  %v357 = vadd.f32 %v71, %v356
  %v358 = vpop.f32.mrf.mxu0
  %359 = vmatprep.mubr.f32.mxu0 0.0
  %360 = vmatmul.mubr.f32.gmra.mxu0 %v150
  %v361 = vpop.f32.mrf.mxu0
  %v362 = vadd.f32 %v71, %v361
  %v363 = vpop.f32.mrf.mxu0
  %364 = vmatprep.mubr.f32.mxu0 0.0
  %365 = vmatmul.mubr.f32.gmra.mxu0 %v153
  %v366 = vpop.f32.mrf.mxu0
  %v367 = vadd.f32 %v71, %v366
  %v368 = vpop.f32.mrf.mxu0
  %369 = vmatprep.mubr.f32.mxu0 0.0
  %370 = vmatmul.mubr.f32.gmra.mxu0 %v156
  %v371 = vpop.f32.mrf.mxu0
  %v372 = vadd.f32 %v71, %v371
  %v373 = vpop.f32.mrf.mxu0
  %374 = vmatprep.mubr.f32.mxu0 0.0
  %375 = vmatmul.mubr.f32.gmra.mxu0 %v159
  %v376 = vpop.f32.mrf.mxu0
  %v377 = vadd.f32 %v71, %v376
  %v378 = vpop.f32.mrf.mxu0
  %379 = vmatprep.mubr.f32.mxu0 0.0
  %380 = vmatmul.mubr.f32.gmra.mxu0 %v162
  %v381 = vpop.f32.mrf.mxu0
  %v382 = vadd.f32 %v71, %v381
  %v383 = vpop.f32.mrf.mxu0
  %384 = vmatprep.mubr.f32.mxu0 0.0
  %385 = vmatmul.mubr.f32.gmra.mxu0 %v165
  %v386 = vpop.f32.mrf.mxu0
  %v387 = vadd.f32 %v71, %v386
  %v388 = vpop.f32.mrf.mxu0
  %389 = vmatprep.mubr.f32.mxu0 0.0
  %390 = vmatmul.mubr.f32.gmra.mxu0 %v168
  %v391 = vpop.f32.mrf.mxu0
  %v392 = vadd.f32 %v71, %v391
  %v393 = vpop.f32.mrf.mxu0
  %394 = vdwg.mxu0
  %vm395 = vcmp.gt.f32.partialorder %v237, 0.0
  %vm396 = vcmp.gt.f32.partialorder %v242, 0.0
  %vm397 = vcmp.gt.f32.partialorder %v247, 0.0
  %vm398 = vcmp.gt.f32.partialorder %v252, 0.0
  %vm399 = vcmp.gt.f32.partialorder %v257, 0.0
  %vm400 = vcmp.gt.f32.partialorder %v262, 0.0
  %vm401 = vcmp.gt.f32.partialorder %v267, 0.0
  %vm402 = vcmp.gt.f32.partialorder %v272, 0.0
  %vm403 = vcmp.gt.f32.partialorder %v277, 0.0
  %vm404 = vcmp.gt.f32.partialorder %v282, 0.0
  %vm405 = vcmp.gt.f32.partialorder %v287, 0.0
  %vm406 = vcmp.gt.f32.partialorder %v292, 0.0
  %vm407 = vcmp.gt.f32.partialorder %v297, 0.0
  %vm408 = vcmp.gt.f32.partialorder %v302, 0.0
  %vm409 = vcmp.gt.f32.partialorder %v307, 0.0
  %vm410 = vcmp.gt.f32.partialorder %v312, 0.0
  %vm411 = vcmp.gt.f32.partialorder %v317, 0.0
  %vm412 = vcmp.gt.f32.partialorder %v322, 0.0
  %vm413 = vcmp.gt.f32.partialorder %v327, 0.0
  %vm414 = vcmp.gt.f32.partialorder %v332, 0.0
  %vm415 = vcmp.gt.f32.partialorder %v337, 0.0
  %vm416 = vcmp.gt.f32.partialorder %v342, 0.0
  %vm417 = vcmp.gt.f32.partialorder %v347, 0.0
  %vm418 = vcmp.gt.f32.partialorder %v352, 0.0
  %vm419 = vcmp.gt.f32.partialorder %v357, 0.0
  %vm420 = vcmp.gt.f32.partialorder %v362, 0.0
  %vm421 = vcmp.gt.f32.partialorder %v367, 0.0
  %vm422 = vcmp.gt.f32.partialorder %v372, 0.0
  %vm423 = vcmp.gt.f32.partialorder %v377, 0.0
  %vm424 = vcmp.gt.f32.partialorder %v382, 0.0
  %vm425 = vcmp.gt.f32.partialorder %v387, 0.0
  %vm426 = vcmp.gt.f32.partialorder %v392, 0.0
  %v427 = vmul.f32 %v237, 0.01
  %v428 = vmul.f32 %v242, 0.01
  %v429 = vmul.f32 %v247, 0.01
  %v430 = vmul.f32 %v252, 0.01
  %v431 = vmul.f32 %v257, 0.01
  %v432 = vmul.f32 %v262, 0.01
  %v433 = vmul.f32 %v267, 0.01
  %v434 = vmul.f32 %v272, 0.01
  %v435 = vmul.f32 %v277, 0.01
  %v436 = vmul.f32 %v282, 0.01
  %v437 = vmul.f32 %v287, 0.01
  %v438 = vmul.f32 %v292, 0.01
  %v439 = vmul.f32 %v297, 0.01
  %v440 = vmul.f32 %v302, 0.01
  %v441 = vmul.f32 %v307, 0.01
  %v442 = vmul.f32 %v312, 0.01
  %v443 = vmul.f32 %v317, 0.01
  %v444 = vmul.f32 %v322, 0.01
  %v445 = vmul.f32 %v327, 0.01
  %v446 = vmul.f32 %v332, 0.01
  %v447 = vmul.f32 %v337, 0.01
  %v448 = vmul.f32 %v342, 0.01
  %v449 = vmul.f32 %v347, 0.01
  %v450 = vmul.f32 %v352, 0.01
  %v451 = vmul.f32 %v357, 0.01
  %v452 = vmul.f32 %v362, 0.01
  %v453 = vmul.f32 %v367, 0.01
  %v454 = vmul.f32 %v372, 0.01
  %v455 = vmul.f32 %v377, 0.01
  %v456 = vmul.f32 %v382, 0.01
  %v457 = vmul.f32 %v387, 0.01
  %v458 = vmul.f32 %v392, 0.01
  %v459 = vsel %vm395, %v237, %v427
  %v460 = vsel %vm396, %v242, %v428
  %v461 = vsel %vm397, %v247, %v429
  %v462 = vsel %vm398, %v252, %v430
  %v463 = vsel %vm399, %v257, %v431
  %v464 = vsel %vm400, %v262, %v432
  %v465 = vsel %vm401, %v267, %v433
  %v466 = vsel %vm402, %v272, %v434
  %v467 = vsel %vm403, %v277, %v435
  %v468 = vsel %vm404, %v282, %v436
  %v469 = vsel %vm405, %v287, %v437
  %v470 = vsel %vm406, %v292, %v438
  %v471 = vsel %vm407, %v297, %v439
  %v472 = vsel %vm408, %v302, %v440
  %v473 = vsel %vm409, %v307, %v441
  %v474 = vsel %vm410, %v312, %v442
  %v475 = vsel %vm411, %v317, %v443
  %v476 = vsel %vm412, %v322, %v444
  %v477 = vsel %vm413, %v327, %v445
  %v478 = vsel %vm414, %v332, %v446
  %v479 = vsel %vm415, %v337, %v447
  %v480 = vsel %vm416, %v342, %v448
  %v481 = vsel %vm417, %v347, %v449
  %v482 = vsel %vm418, %v352, %v450
  %v483 = vsel %vm419, %v357, %v451
  %v484 = vsel %vm420, %v362, %v452
  %v485 = vsel %vm421, %v367, %v453
  %v486 = vsel %vm422, %v372, %v454
  %v487 = vsel %vm423, %v377, %v455
  %v488 = vsel %vm424, %v382, %v456
  %v489 = vsel %vm425, %v387, %v457
  %v490 = vsel %vm426, %v392, %v458
  %v491 = vld [vmem:[%s3] sm:$0xff]
  %v492 = vld [vmem:[%s3 + $0x8] sm:$0xff]
  %v493 = vld [vmem:[%s3 + $0x10] sm:$0xff]
  %v494 = vld [vmem:[%s3 + $0x18] sm:$0xff]
  %v495 = vld [vmem:[%s4] sm:$0x1]
  %v497 = vlaneseq
  %v498 = vshrl.u32 %v497, 7
  %v499 = vsub.s32 0, %v498
  %v500 = vrot.slane %v495, %v499
  %vm502 = vcmask 261120
  %v504 = vsel %vm502, %v459, 0
  %v507 = vsel %vm502, %v460, 0
  %v510 = vsel %vm502, %v461, 0
  %v513 = vsel %vm502, %v462, 0
  %v516 = vsel %vm502, %v463, 0
  %v519 = vsel %vm502, %v464, 0
  %v522 = vsel %vm502, %v465, 0
  %v525 = vsel %vm502, %v466, 0
  %v528 = vsel %vm502, %v467, 0
  %v531 = vsel %vm502, %v468, 0
  %v534 = vsel %vm502, %v469, 0
  %v537 = vsel %vm502, %v470, 0
  %v540 = vsel %vm502, %v471, 0
  %v543 = vsel %vm502, %v472, 0
  %v546 = vsel %vm502, %v473, 0
  %v549 = vsel %vm502, %v474, 0
  %v552 = vsel %vm502, %v475, 0
  %v555 = vsel %vm502, %v476, 0
  %v558 = vsel %vm502, %v477, 0
  %v561 = vsel %vm502, %v478, 0
  %v564 = vsel %vm502, %v479, 0
  %v567 = vsel %vm502, %v480, 0
  %v570 = vsel %vm502, %v481, 0
  %v573 = vsel %vm502, %v482, 0
  %v576 = vsel %vm502, %v483, 0
  %v579 = vsel %vm502, %v484, 0
  %v582 = vsel %vm502, %v485, 0
  %v585 = vsel %vm502, %v486, 0
  %v588 = vsel %vm502, %v487, 0
  %v591 = vsel %vm502, %v488, 0
  %v594 = vsel %vm502, %v489, 0
  %v597 = vsel %vm502, %v490, 0
  %599 = vmatprep.subr.mxu0 0.0
  %600 = vmatpush1.msra.mxu0 0.0
  %601 = vmatprep.subr.mxu0 0.0
  %602 = vmatpush1.msra.mxu0 0.0
  %603 = vmatprep.subr.mxu0 0.0
  %604 = vmatpush1.msra.mxu0 0.0
  %605 = vmatprep.subr.mxu0 0.0
  %606 = vmatpush1.msra.mxu0 0.0
  %607 = vmatprep.subr.mxu0 0.0
  %608 = vmatpush1.msra.mxu0 0.0
  %609 = vmatprep.subr.mxu0 0.0
  %610 = vmatpush1.msra.mxu0 0.0
  %611 = vmatprep.subr.mxu0 0.0
  %612 = vmatpush1.msra.mxu0 0.0
  %613 = vmatprep.subr.mxu0 0.0
  %614 = vmatpush1.msra.mxu0 0.0
  %615 = vmatprep.subr.mxu0 0.0
  %616 = vmatpush1.msra.mxu0 0.0
  %617 = vmatprep.subr.mxu0 0.0
  %618 = vmatpush1.msra.mxu0 0.0
  %619 = vmatprep.subr.mxu0 0.0
  %620 = vmatpush1.msra.mxu0 0.0
  %621 = vmatprep.subr.mxu0 0.0
  %622 = vmatpush1.msra.mxu0 0.0
  %623 = vmatprep.subr.mxu0 0.0
  %624 = vmatpush1.msra.mxu0 %v494
  %625 = vmatprep.subr.mxu0 0.0
  %626 = vmatpush1.msra.mxu0 %v493
  %627 = vmatprep.subr.mxu0 0.0
  %628 = vmatpush1.msra.mxu0 %v492
  %629 = vmatprep.subr.mxu0 0.0
  %630 = vmatpush1.msra.mxu0 %v491
  %631 = vmatprep.subr.mxu0 0.0
  %632 = vmatpush2.msra.mxu0 0.0
  %633 = vmatprep.subr.mxu0 0.0
  %634 = vmatpush2.msra.mxu0 0.0
  %635 = vmatprep.subr.mxu0 0.0
  %636 = vmatpush2.msra.mxu0 0.0
  %637 = vmatprep.subr.mxu0 0.0
  %638 = vmatpush2.msra.mxu0 0.0
  %639 = vmatprep.subr.mxu0 0.0
  %640 = vmatpush2.msra.mxu0 0.0
  %641 = vmatprep.subr.mxu0 0.0
  %642 = vmatpush2.msra.mxu0 0.0
  %643 = vmatprep.subr.mxu0 0.0
  %644 = vmatpush2.msra.mxu0 0.0
  %645 = vmatprep.subr.mxu0 0.0
  %646 = vmatpush2.msra.mxu0 0.0
  %647 = vmatprep.subr.mxu0 0.0
  %648 = vmatpush2.msra.mxu0 0.0
  %649 = vmatprep.subr.mxu0 0.0
  %650 = vmatpush2.msra.mxu0 0.0
  %651 = vmatprep.subr.mxu0 0.0
  %652 = vmatpush2.msra.mxu0 0.0
  %653 = vmatprep.subr.mxu0 0.0
  %654 = vmatpush2.msra.mxu0 0.0
  %655 = vmatprep.subr.mxu0 0.0
  %656 = vmatpush2.msra.mxu0 0.0
  %657 = vmatprep.subr.mxu0 0.0
  %658 = vmatpush2.msra.mxu0 0.0
  %659 = vmatprep.subr.mxu0 0.0
  %660 = vmatpush2.msra.mxu0 0.0
  %661 = vmatprep.subr.mxu0 0.0
  %662 = vmatpush2.msra.mxu0 0.0
  %663 = vmatprep.mubr.f32.mxu0 0.0
  %664 = vmatmul.mubr.f32.gmra.mxu0 %v504
  %v665 = vpop.f32.mrf.mxu0
  %v666 = vadd.f32 %v500, %v665
  %v667 = vpop.f32.mrf.mxu0
  %668 = vmatprep.mubr.f32.mxu0 0.0
  %669 = vmatmul.mubr.f32.gmra.mxu0 %v507
  %v670 = vpop.f32.mrf.mxu0
  %v671 = vadd.f32 %v500, %v670
  %v672 = vpop.f32.mrf.mxu0
  %673 = vmatprep.mubr.f32.mxu0 0.0
  %674 = vmatmul.mubr.f32.gmra.mxu0 %v510
  %v675 = vpop.f32.mrf.mxu0
  %v676 = vadd.f32 %v500, %v675
  %v677 = vpop.f32.mrf.mxu0
  %678 = vmatprep.mubr.f32.mxu0 0.0
  %679 = vmatmul.mubr.f32.gmra.mxu0 %v513
  %v680 = vpop.f32.mrf.mxu0
  %v681 = vadd.f32 %v500, %v680
  %v682 = vpop.f32.mrf.mxu0
  %683 = vmatprep.mubr.f32.mxu0 0.0
  %684 = vmatmul.mubr.f32.gmra.mxu0 %v516
  %v685 = vpop.f32.mrf.mxu0
  %v686 = vadd.f32 %v500, %v685
  %v687 = vpop.f32.mrf.mxu0
  %688 = vmatprep.mubr.f32.mxu0 0.0
  %689 = vmatmul.mubr.f32.gmra.mxu0 %v519
  %v690 = vpop.f32.mrf.mxu0
  %v691 = vadd.f32 %v500, %v690
  %v692 = vpop.f32.mrf.mxu0
  %693 = vmatprep.mubr.f32.mxu0 0.0
  %694 = vmatmul.mubr.f32.gmra.mxu0 %v522
  %v695 = vpop.f32.mrf.mxu0
  %v696 = vadd.f32 %v500, %v695
  %v697 = vpop.f32.mrf.mxu0
  %698 = vmatprep.mubr.f32.mxu0 0.0
  %699 = vmatmul.mubr.f32.gmra.mxu0 %v525
  %v700 = vpop.f32.mrf.mxu0
  %v701 = vadd.f32 %v500, %v700
  %v702 = vpop.f32.mrf.mxu0
  %703 = vmatprep.mubr.f32.mxu0 0.0
  %704 = vmatmul.mubr.f32.gmra.mxu0 %v528
  %v705 = vpop.f32.mrf.mxu0
  %v706 = vadd.f32 %v500, %v705
  %v707 = vpop.f32.mrf.mxu0
  %708 = vmatprep.mubr.f32.mxu0 0.0
  %709 = vmatmul.mubr.f32.gmra.mxu0 %v531
  %v710 = vpop.f32.mrf.mxu0
  %v711 = vadd.f32 %v500, %v710
  %v712 = vpop.f32.mrf.mxu0
  %713 = vmatprep.mubr.f32.mxu0 0.0
  %714 = vmatmul.mubr.f32.gmra.mxu0 %v534
  %v715 = vpop.f32.mrf.mxu0
  %v716 = vadd.f32 %v500, %v715
  %v717 = vpop.f32.mrf.mxu0
  %718 = vmatprep.mubr.f32.mxu0 0.0
  %719 = vmatmul.mubr.f32.gmra.mxu0 %v537
  %v720 = vpop.f32.mrf.mxu0
  %v721 = vadd.f32 %v500, %v720
  %v722 = vpop.f32.mrf.mxu0
  %723 = vmatprep.mubr.f32.mxu0 0.0
  %724 = vmatmul.mubr.f32.gmra.mxu0 %v540
  %v725 = vpop.f32.mrf.mxu0
  %v726 = vadd.f32 %v500, %v725
  %v727 = vpop.f32.mrf.mxu0
  %728 = vmatprep.mubr.f32.mxu0 0.0
  %729 = vmatmul.mubr.f32.gmra.mxu0 %v543
  %v730 = vpop.f32.mrf.mxu0
  %v731 = vadd.f32 %v500, %v730
  %v732 = vpop.f32.mrf.mxu0
  %733 = vmatprep.mubr.f32.mxu0 0.0
  %734 = vmatmul.mubr.f32.gmra.mxu0 %v546
  %v735 = vpop.f32.mrf.mxu0
  %v736 = vadd.f32 %v500, %v735
  %v737 = vpop.f32.mrf.mxu0
  %738 = vmatprep.mubr.f32.mxu0 0.0
  %739 = vmatmul.mubr.f32.gmra.mxu0 %v549
  %v740 = vpop.f32.mrf.mxu0
  %v741 = vadd.f32 %v500, %v740
  %v742 = vpop.f32.mrf.mxu0
  %743 = vmatprep.mubr.f32.mxu0 0.0
  %744 = vmatmul.mubr.f32.gmra.mxu0 %v552
  %v745 = vpop.f32.mrf.mxu0
  %v746 = vadd.f32 %v500, %v745
  %v747 = vpop.f32.mrf.mxu0
  %748 = vmatprep.mubr.f32.mxu0 0.0
  %749 = vmatmul.mubr.f32.gmra.mxu0 %v555
  %v750 = vpop.f32.mrf.mxu0
  %v751 = vadd.f32 %v500, %v750
  %v752 = vpop.f32.mrf.mxu0
  %753 = vmatprep.mubr.f32.mxu0 0.0
  %754 = vmatmul.mubr.f32.gmra.mxu0 %v558
  %v755 = vpop.f32.mrf.mxu0
  %v756 = vadd.f32 %v500, %v755
  %v757 = vpop.f32.mrf.mxu0
  %758 = vmatprep.mubr.f32.mxu0 0.0
  %759 = vmatmul.mubr.f32.gmra.mxu0 %v561
  %v760 = vpop.f32.mrf.mxu0
  %v761 = vadd.f32 %v500, %v760
  %v762 = vpop.f32.mrf.mxu0
  %763 = vmatprep.mubr.f32.mxu0 0.0
  %764 = vmatmul.mubr.f32.gmra.mxu0 %v564
  %v765 = vpop.f32.mrf.mxu0
  %v766 = vadd.f32 %v500, %v765
  %v767 = vpop.f32.mrf.mxu0
  %768 = vmatprep.mubr.f32.mxu0 0.0
  %769 = vmatmul.mubr.f32.gmra.mxu0 %v567
  %v770 = vpop.f32.mrf.mxu0
  %v771 = vadd.f32 %v500, %v770
  %v772 = vpop.f32.mrf.mxu0
  %773 = vmatprep.mubr.f32.mxu0 0.0
  %774 = vmatmul.mubr.f32.gmra.mxu0 %v570
  %v775 = vpop.f32.mrf.mxu0
  %v776 = vadd.f32 %v500, %v775
  %v777 = vpop.f32.mrf.mxu0
  %778 = vmatprep.mubr.f32.mxu0 0.0
  %779 = vmatmul.mubr.f32.gmra.mxu0 %v573
  %v780 = vpop.f32.mrf.mxu0
  %v781 = vadd.f32 %v500, %v780
  %v782 = vpop.f32.mrf.mxu0
  %783 = vmatprep.mubr.f32.mxu0 0.0
  %784 = vmatmul.mubr.f32.gmra.mxu0 %v576
  %v785 = vpop.f32.mrf.mxu0
  %v786 = vadd.f32 %v500, %v785
  %v787 = vpop.f32.mrf.mxu0
  %788 = vmatprep.mubr.f32.mxu0 0.0
  %789 = vmatmul.mubr.f32.gmra.mxu0 %v579
  %v790 = vpop.f32.mrf.mxu0
  %v791 = vadd.f32 %v500, %v790
  %v792 = vpop.f32.mrf.mxu0
  %793 = vmatprep.mubr.f32.mxu0 0.0
  %794 = vmatmul.mubr.f32.gmra.mxu0 %v582
  %v795 = vpop.f32.mrf.mxu0
  %v796 = vadd.f32 %v500, %v795
  %v797 = vpop.f32.mrf.mxu0
  %798 = vmatprep.mubr.f32.mxu0 0.0
  %799 = vmatmul.mubr.f32.gmra.mxu0 %v585
  %v800 = vpop.f32.mrf.mxu0
  %v801 = vadd.f32 %v500, %v800
  %v802 = vpop.f32.mrf.mxu0
  %803 = vmatprep.mubr.f32.mxu0 0.0
  %804 = vmatmul.mubr.f32.gmra.mxu0 %v588
  %v805 = vpop.f32.mrf.mxu0
  %v806 = vadd.f32 %v500, %v805
  %v807 = vpop.f32.mrf.mxu0
  %808 = vmatprep.mubr.f32.mxu0 0.0
  %809 = vmatmul.mubr.f32.gmra.mxu0 %v591
  %v810 = vpop.f32.mrf.mxu0
  %v811 = vadd.f32 %v500, %v810
  %v812 = vpop.f32.mrf.mxu0
  %813 = vmatprep.mubr.f32.mxu0 0.0
  %814 = vmatmul.mubr.f32.gmra.mxu0 %v594
  %v815 = vpop.f32.mrf.mxu0
  %v816 = vadd.f32 %v500, %v815
  %v817 = vpop.f32.mrf.mxu0
  %818 = vmatprep.mubr.f32.mxu0 0.0
  %819 = vmatmul.mubr.f32.gmra.mxu0 %v597
  %v820 = vpop.f32.mrf.mxu0
  %v821 = vadd.f32 %v500, %v820
  %v822 = vpop.f32.mrf.mxu0
  %823 = vdwg.mxu0
  %vm824 = vcmp.gt.f32.partialorder %v666, 0.0
  %vm825 = vcmp.gt.f32.partialorder %v671, 0.0
  %vm826 = vcmp.gt.f32.partialorder %v676, 0.0
  %vm827 = vcmp.gt.f32.partialorder %v681, 0.0
  %vm828 = vcmp.gt.f32.partialorder %v686, 0.0
  %vm829 = vcmp.gt.f32.partialorder %v691, 0.0
  %vm830 = vcmp.gt.f32.partialorder %v696, 0.0
  %vm831 = vcmp.gt.f32.partialorder %v701, 0.0
  %vm832 = vcmp.gt.f32.partialorder %v706, 0.0
  %vm833 = vcmp.gt.f32.partialorder %v711, 0.0
  %vm834 = vcmp.gt.f32.partialorder %v716, 0.0
  %vm835 = vcmp.gt.f32.partialorder %v721, 0.0
  %vm836 = vcmp.gt.f32.partialorder %v726, 0.0
  %vm837 = vcmp.gt.f32.partialorder %v731, 0.0
  %vm838 = vcmp.gt.f32.partialorder %v736, 0.0
  %vm839 = vcmp.gt.f32.partialorder %v741, 0.0
  %vm840 = vcmp.gt.f32.partialorder %v746, 0.0
  %vm841 = vcmp.gt.f32.partialorder %v751, 0.0
  %vm842 = vcmp.gt.f32.partialorder %v756, 0.0
  %vm843 = vcmp.gt.f32.partialorder %v761, 0.0
  %vm844 = vcmp.gt.f32.partialorder %v766, 0.0
  %vm845 = vcmp.gt.f32.partialorder %v771, 0.0
  %vm846 = vcmp.gt.f32.partialorder %v776, 0.0
  %vm847 = vcmp.gt.f32.partialorder %v781, 0.0
  %vm848 = vcmp.gt.f32.partialorder %v786, 0.0
  %vm849 = vcmp.gt.f32.partialorder %v791, 0.0
  %vm850 = vcmp.gt.f32.partialorder %v796, 0.0
  %vm851 = vcmp.gt.f32.partialorder %v801, 0.0
  %vm852 = vcmp.gt.f32.partialorder %v806, 0.0
  %vm853 = vcmp.gt.f32.partialorder %v811, 0.0
  %vm854 = vcmp.gt.f32.partialorder %v816, 0.0
  %vm855 = vcmp.gt.f32.partialorder %v821, 0.0
  %v856 = vmul.f32 %v666, 0.01
  %v857 = vmul.f32 %v671, 0.01
  %v858 = vmul.f32 %v676, 0.01
  %v859 = vmul.f32 %v681, 0.01
  %v860 = vmul.f32 %v686, 0.01
  %v861 = vmul.f32 %v691, 0.01
  %v862 = vmul.f32 %v696, 0.01
  %v863 = vmul.f32 %v701, 0.01
  %v864 = vmul.f32 %v706, 0.01
  %v865 = vmul.f32 %v711, 0.01
  %v866 = vmul.f32 %v716, 0.01
  %v867 = vmul.f32 %v721, 0.01
  %v868 = vmul.f32 %v726, 0.01
  %v869 = vmul.f32 %v731, 0.01
  %v870 = vmul.f32 %v736, 0.01
  %v871 = vmul.f32 %v741, 0.01
  %v872 = vmul.f32 %v746, 0.01
  %v873 = vmul.f32 %v751, 0.01
  %v874 = vmul.f32 %v756, 0.01
  %v875 = vmul.f32 %v761, 0.01
  %v876 = vmul.f32 %v766, 0.01
  %v877 = vmul.f32 %v771, 0.01
  %v878 = vmul.f32 %v776, 0.01
  %v879 = vmul.f32 %v781, 0.01
  %v880 = vmul.f32 %v786, 0.01
  %v881 = vmul.f32 %v791, 0.01
  %v882 = vmul.f32 %v796, 0.01
  %v883 = vmul.f32 %v801, 0.01
  %v884 = vmul.f32 %v806, 0.01
  %v885 = vmul.f32 %v811, 0.01
  %v886 = vmul.f32 %v816, 0.01
  %v887 = vmul.f32 %v821, 0.01
  %v888 = vsel %vm824, %v666, %v856
  %v889 = vsel %vm825, %v671, %v857
  %v890 = vsel %vm826, %v676, %v858
  %v891 = vsel %vm827, %v681, %v859
  %v892 = vsel %vm828, %v686, %v860
  %v893 = vsel %vm829, %v691, %v861
  %v894 = vsel %vm830, %v696, %v862
  %v895 = vsel %vm831, %v701, %v863
  %v896 = vsel %vm832, %v706, %v864
  %v897 = vsel %vm833, %v711, %v865
  %v898 = vsel %vm834, %v716, %v866
  %v899 = vsel %vm835, %v721, %v867
  %v900 = vsel %vm836, %v726, %v868
  %v901 = vsel %vm837, %v731, %v869
  %v902 = vsel %vm838, %v736, %v870
  %v903 = vsel %vm839, %v741, %v871
  %v904 = vsel %vm840, %v746, %v872
  %v905 = vsel %vm841, %v751, %v873
  %v906 = vsel %vm842, %v756, %v874
  %v907 = vsel %vm843, %v761, %v875
  %v908 = vsel %vm844, %v766, %v876
  %v909 = vsel %vm845, %v771, %v877
  %v910 = vsel %vm846, %v776, %v878
  %v911 = vsel %vm847, %v781, %v879
  %v912 = vsel %vm848, %v786, %v880
  %v913 = vsel %vm849, %v791, %v881
  %v914 = vsel %vm850, %v796, %v882
  %v915 = vsel %vm851, %v801, %v883
  %v916 = vsel %vm852, %v806, %v884
  %v917 = vsel %vm853, %v811, %v885
  %v918 = vsel %vm854, %v816, %v886
  %v919 = vsel %vm855, %v821, %v887
  %v920 = vld [vmem:[%s5] sm:$0xff]
  %v921 = vld [vmem:[%s5 + $0x8] sm:$0xff]
  %v922 = vld [vmem:[%s5 + $0x10] sm:$0xff]
  %v923 = vld [vmem:[%s5 + $0x18] sm:$0xff]
  %v924 = vld [vmem:[%s6] sm:$0x1]
  %v926 = vlaneseq
  %v927 = vshrl.u32 %v926, 7
  %v928 = vsub.s32 0, %v927
  %v929 = vrot.slane %v924, %v928
  %v932 = vsel %vm502, %v888, 0
  %v935 = vsel %vm502, %v889, 0
  %v938 = vsel %vm502, %v890, 0
  %v941 = vsel %vm502, %v891, 0
  %v944 = vsel %vm502, %v892, 0
  %v947 = vsel %vm502, %v893, 0
  %v950 = vsel %vm502, %v894, 0
  %v953 = vsel %vm502, %v895, 0
  %v956 = vsel %vm502, %v896, 0
  %v959 = vsel %vm502, %v897, 0
  %v962 = vsel %vm502, %v898, 0
  %v965 = vsel %vm502, %v899, 0
  %v968 = vsel %vm502, %v900, 0
  %v971 = vsel %vm502, %v901, 0
  %v974 = vsel %vm502, %v902, 0
  %v977 = vsel %vm502, %v903, 0
  %v980 = vsel %vm502, %v904, 0
  %v983 = vsel %vm502, %v905, 0
  %v986 = vsel %vm502, %v906, 0
  %v989 = vsel %vm502, %v907, 0
  %v992 = vsel %vm502, %v908, 0
  %v995 = vsel %vm502, %v909, 0
  %v998 = vsel %vm502, %v910, 0
  %v1001 = vsel %vm502, %v911, 0
  %v1004 = vsel %vm502, %v912, 0
  %v1007 = vsel %vm502, %v913, 0
  %v1010 = vsel %vm502, %v914, 0
  %v1013 = vsel %vm502, %v915, 0
  %v1016 = vsel %vm502, %v916, 0
  %v1019 = vsel %vm502, %v917, 0
  %v1022 = vsel %vm502, %v918, 0
  %v1025 = vsel %vm502, %v919, 0
  %1027 = vmatprep.subr.mxu0 0.0
  %1028 = vmatpush1.msra.mxu0 0.0
  %1029 = vmatprep.subr.mxu0 0.0
  %1030 = vmatpush1.msra.mxu0 0.0
  %1031 = vmatprep.subr.mxu0 0.0
  %1032 = vmatpush1.msra.mxu0 0.0
  %1033 = vmatprep.subr.mxu0 0.0
  %1034 = vmatpush1.msra.mxu0 0.0
  %1035 = vmatprep.subr.mxu0 0.0
  %1036 = vmatpush1.msra.mxu0 0.0
  %1037 = vmatprep.subr.mxu0 0.0
  %1038 = vmatpush1.msra.mxu0 0.0
  %1039 = vmatprep.subr.mxu0 0.0
  %1040 = vmatpush1.msra.mxu0 0.0
  %1041 = vmatprep.subr.mxu0 0.0
  %1042 = vmatpush1.msra.mxu0 0.0
  %1043 = vmatprep.subr.mxu0 0.0
  %1044 = vmatpush1.msra.mxu0 0.0
  %1045 = vmatprep.subr.mxu0 0.0
  %1046 = vmatpush1.msra.mxu0 0.0
  %1047 = vmatprep.subr.mxu0 0.0
  %1048 = vmatpush1.msra.mxu0 0.0
  %1049 = vmatprep.subr.mxu0 0.0
  %1050 = vmatpush1.msra.mxu0 0.0
  %1051 = vmatprep.subr.mxu0 0.0
  %1052 = vmatpush1.msra.mxu0 %v923
  %1053 = vmatprep.subr.mxu0 0.0
  %1054 = vmatpush1.msra.mxu0 %v922
  %1055 = vmatprep.subr.mxu0 0.0
  %1056 = vmatpush1.msra.mxu0 %v921
  %1057 = vmatprep.subr.mxu0 0.0
  %1058 = vmatpush1.msra.mxu0 %v920
  %1059 = vmatprep.subr.mxu0 0.0
  %1060 = vmatpush2.msra.mxu0 0.0
  %1061 = vmatprep.subr.mxu0 0.0
  %1062 = vmatpush2.msra.mxu0 0.0
  %1063 = vmatprep.subr.mxu0 0.0
  %1064 = vmatpush2.msra.mxu0 0.0
  %1065 = vmatprep.subr.mxu0 0.0
  %1066 = vmatpush2.msra.mxu0 0.0
  %1067 = vmatprep.subr.mxu0 0.0
  %1068 = vmatpush2.msra.mxu0 0.0
  %1069 = vmatprep.subr.mxu0 0.0
  %1070 = vmatpush2.msra.mxu0 0.0
  %1071 = vmatprep.subr.mxu0 0.0
  %1072 = vmatpush2.msra.mxu0 0.0
  %1073 = vmatprep.subr.mxu0 0.0
  %1074 = vmatpush2.msra.mxu0 0.0
  %1075 = vmatprep.subr.mxu0 0.0
  %1076 = vmatpush2.msra.mxu0 0.0
  %1077 = vmatprep.subr.mxu0 0.0
  %1078 = vmatpush2.msra.mxu0 0.0
  %1079 = vmatprep.subr.mxu0 0.0
  %1080 = vmatpush2.msra.mxu0 0.0
  %1081 = vmatprep.subr.mxu0 0.0
  %1082 = vmatpush2.msra.mxu0 0.0
  %1083 = vmatprep.subr.mxu0 0.0
  %1084 = vmatpush2.msra.mxu0 0.0
  %1085 = vmatprep.subr.mxu0 0.0
  %1086 = vmatpush2.msra.mxu0 0.0
  %1087 = vmatprep.subr.mxu0 0.0
  %1088 = vmatpush2.msra.mxu0 0.0
  %1089 = vmatprep.subr.mxu0 0.0
  %1090 = vmatpush2.msra.mxu0 0.0
  %1091 = vmatprep.mubr.f32.mxu0 0.0
  %1092 = vmatmul.mubr.f32.gmra.mxu0 %v932
  %v1093 = vpop.f32.mrf.mxu0
  %v1094 = vadd.f32 %v929, %v1093
  %v1095 = vpop.f32.mrf.mxu0
  %1096 = vmatprep.mubr.f32.mxu0 0.0
  %1097 = vmatmul.mubr.f32.gmra.mxu0 %v935
  %v1098 = vpop.f32.mrf.mxu0
  %v1099 = vadd.f32 %v929, %v1098
  %v1100 = vpop.f32.mrf.mxu0
  %1101 = vmatprep.mubr.f32.mxu0 0.0
  %1102 = vmatmul.mubr.f32.gmra.mxu0 %v938
  %v1103 = vpop.f32.mrf.mxu0
  %v1104 = vadd.f32 %v929, %v1103
  %v1105 = vpop.f32.mrf.mxu0
  %1106 = vmatprep.mubr.f32.mxu0 0.0
  %1107 = vmatmul.mubr.f32.gmra.mxu0 %v941
  %v1108 = vpop.f32.mrf.mxu0
  %v1109 = vadd.f32 %v929, %v1108
  %v1110 = vpop.f32.mrf.mxu0
  %1111 = vmatprep.mubr.f32.mxu0 0.0
  %1112 = vmatmul.mubr.f32.gmra.mxu0 %v944
  %v1113 = vpop.f32.mrf.mxu0
  %v1114 = vadd.f32 %v929, %v1113
  %v1115 = vpop.f32.mrf.mxu0
  %1116 = vmatprep.mubr.f32.mxu0 0.0
  %1117 = vmatmul.mubr.f32.gmra.mxu0 %v947
  %v1118 = vpop.f32.mrf.mxu0
  %v1119 = vadd.f32 %v929, %v1118
  %v1120 = vpop.f32.mrf.mxu0
  %1121 = vmatprep.mubr.f32.mxu0 0.0
  %1122 = vmatmul.mubr.f32.gmra.mxu0 %v950
  %v1123 = vpop.f32.mrf.mxu0
  %v1124 = vadd.f32 %v929, %v1123
  %v1125 = vpop.f32.mrf.mxu0
  %1126 = vmatprep.mubr.f32.mxu0 0.0
  %1127 = vmatmul.mubr.f32.gmra.mxu0 %v953
  %v1128 = vpop.f32.mrf.mxu0
  %v1129 = vadd.f32 %v929, %v1128
  %v1130 = vpop.f32.mrf.mxu0
  %1131 = vmatprep.mubr.f32.mxu0 0.0
  %1132 = vmatmul.mubr.f32.gmra.mxu0 %v956
  %v1133 = vpop.f32.mrf.mxu0
  %v1134 = vadd.f32 %v929, %v1133
  %v1135 = vpop.f32.mrf.mxu0
  %1136 = vmatprep.mubr.f32.mxu0 0.0
  %1137 = vmatmul.mubr.f32.gmra.mxu0 %v959
  %v1138 = vpop.f32.mrf.mxu0
  %v1139 = vadd.f32 %v929, %v1138
  %v1140 = vpop.f32.mrf.mxu0
  %1141 = vmatprep.mubr.f32.mxu0 0.0
  %1142 = vmatmul.mubr.f32.gmra.mxu0 %v962
  %v1143 = vpop.f32.mrf.mxu0
  %v1144 = vadd.f32 %v929, %v1143
  %v1145 = vpop.f32.mrf.mxu0
  %1146 = vmatprep.mubr.f32.mxu0 0.0
  %1147 = vmatmul.mubr.f32.gmra.mxu0 %v965
  %v1148 = vpop.f32.mrf.mxu0
  %v1149 = vadd.f32 %v929, %v1148
  %v1150 = vpop.f32.mrf.mxu0
  %1151 = vmatprep.mubr.f32.mxu0 0.0
  %1152 = vmatmul.mubr.f32.gmra.mxu0 %v968
  %v1153 = vpop.f32.mrf.mxu0
  %v1154 = vadd.f32 %v929, %v1153
  %v1155 = vpop.f32.mrf.mxu0
  %1156 = vmatprep.mubr.f32.mxu0 0.0
  %1157 = vmatmul.mubr.f32.gmra.mxu0 %v971
  %v1158 = vpop.f32.mrf.mxu0
  %v1159 = vadd.f32 %v929, %v1158
  %v1160 = vpop.f32.mrf.mxu0
  %1161 = vmatprep.mubr.f32.mxu0 0.0
  %1162 = vmatmul.mubr.f32.gmra.mxu0 %v974
  %v1163 = vpop.f32.mrf.mxu0
  %v1164 = vadd.f32 %v929, %v1163
  %v1165 = vpop.f32.mrf.mxu0
  %1166 = vmatprep.mubr.f32.mxu0 0.0
  %1167 = vmatmul.mubr.f32.gmra.mxu0 %v977
  %v1168 = vpop.f32.mrf.mxu0
  %v1169 = vadd.f32 %v929, %v1168
  %v1170 = vpop.f32.mrf.mxu0
  %1171 = vmatprep.mubr.f32.mxu0 0.0
  %1172 = vmatmul.mubr.f32.gmra.mxu0 %v980
  %v1173 = vpop.f32.mrf.mxu0
  %v1174 = vadd.f32 %v929, %v1173
  %v1175 = vpop.f32.mrf.mxu0
  %1176 = vmatprep.mubr.f32.mxu0 0.0
  %1177 = vmatmul.mubr.f32.gmra.mxu0 %v983
  %v1178 = vpop.f32.mrf.mxu0
  %v1179 = vadd.f32 %v929, %v1178
  %v1180 = vpop.f32.mrf.mxu0
  %1181 = vmatprep.mubr.f32.mxu0 0.0
  %1182 = vmatmul.mubr.f32.gmra.mxu0 %v986
  %v1183 = vpop.f32.mrf.mxu0
  %v1184 = vadd.f32 %v929, %v1183
  %v1185 = vpop.f32.mrf.mxu0
  %1186 = vmatprep.mubr.f32.mxu0 0.0
  %1187 = vmatmul.mubr.f32.gmra.mxu0 %v989
  %v1188 = vpop.f32.mrf.mxu0
  %v1189 = vadd.f32 %v929, %v1188
  %v1190 = vpop.f32.mrf.mxu0
  %1191 = vmatprep.mubr.f32.mxu0 0.0
  %1192 = vmatmul.mubr.f32.gmra.mxu0 %v992
  %v1193 = vpop.f32.mrf.mxu0
  %v1194 = vadd.f32 %v929, %v1193
  %v1195 = vpop.f32.mrf.mxu0
  %1196 = vmatprep.mubr.f32.mxu0 0.0
  %1197 = vmatmul.mubr.f32.gmra.mxu0 %v995
  %v1198 = vpop.f32.mrf.mxu0
  %v1199 = vadd.f32 %v929, %v1198
  %v1200 = vpop.f32.mrf.mxu0
  %1201 = vmatprep.mubr.f32.mxu0 0.0
  %1202 = vmatmul.mubr.f32.gmra.mxu0 %v998
  %v1203 = vpop.f32.mrf.mxu0
  %v1204 = vadd.f32 %v929, %v1203
  %v1205 = vpop.f32.mrf.mxu0
  %1206 = vmatprep.mubr.f32.mxu0 0.0
  %1207 = vmatmul.mubr.f32.gmra.mxu0 %v1001
  %v1208 = vpop.f32.mrf.mxu0
  %v1209 = vadd.f32 %v929, %v1208
  %v1210 = vpop.f32.mrf.mxu0
  %1211 = vmatprep.mubr.f32.mxu0 0.0
  %1212 = vmatmul.mubr.f32.gmra.mxu0 %v1004
  %v1213 = vpop.f32.mrf.mxu0
  %v1214 = vadd.f32 %v929, %v1213
  %v1215 = vpop.f32.mrf.mxu0
  %1216 = vmatprep.mubr.f32.mxu0 0.0
  %1217 = vmatmul.mubr.f32.gmra.mxu0 %v1007
  %v1218 = vpop.f32.mrf.mxu0
  %v1219 = vadd.f32 %v929, %v1218
  %v1220 = vpop.f32.mrf.mxu0
  %1221 = vmatprep.mubr.f32.mxu0 0.0
  %1222 = vmatmul.mubr.f32.gmra.mxu0 %v1010
  %v1223 = vpop.f32.mrf.mxu0
  %v1224 = vadd.f32 %v929, %v1223
  %v1225 = vpop.f32.mrf.mxu0
  %1226 = vmatprep.mubr.f32.mxu0 0.0
  %1227 = vmatmul.mubr.f32.gmra.mxu0 %v1013
  %v1228 = vpop.f32.mrf.mxu0
  %v1229 = vadd.f32 %v929, %v1228
  %v1230 = vpop.f32.mrf.mxu0
  %1231 = vmatprep.mubr.f32.mxu0 0.0
  %1232 = vmatmul.mubr.f32.gmra.mxu0 %v1016
  %v1233 = vpop.f32.mrf.mxu0
  %v1234 = vadd.f32 %v929, %v1233
  %v1235 = vpop.f32.mrf.mxu0
  %1236 = vmatprep.mubr.f32.mxu0 0.0
  %1237 = vmatmul.mubr.f32.gmra.mxu0 %v1019
  %v1238 = vpop.f32.mrf.mxu0
  %v1239 = vadd.f32 %v929, %v1238
  %v1240 = vpop.f32.mrf.mxu0
  %1241 = vmatprep.mubr.f32.mxu0 0.0
  %1242 = vmatmul.mubr.f32.gmra.mxu0 %v1022
  %v1243 = vpop.f32.mrf.mxu0
  %v1244 = vadd.f32 %v929, %v1243
  %v1245 = vpop.f32.mrf.mxu0
  %1246 = vmatprep.mubr.f32.mxu0 0.0
  %1247 = vmatmul.mubr.f32.gmra.mxu0 %v1025
  %v1248 = vpop.f32.mrf.mxu0
  %v1249 = vadd.f32 %v929, %v1248
  %v1250 = vpop.f32.mrf.mxu0
  %1251 = vdwg.mxu0
  %vm1252 = vcmp.gt.f32.partialorder %v1094, 0.0
  %vm1253 = vcmp.gt.f32.partialorder %v1099, 0.0
  %vm1254 = vcmp.gt.f32.partialorder %v1104, 0.0
  %vm1255 = vcmp.gt.f32.partialorder %v1109, 0.0
  %vm1256 = vcmp.gt.f32.partialorder %v1114, 0.0
  %vm1257 = vcmp.gt.f32.partialorder %v1119, 0.0
  %vm1258 = vcmp.gt.f32.partialorder %v1124, 0.0
  %vm1259 = vcmp.gt.f32.partialorder %v1129, 0.0
  %vm1260 = vcmp.gt.f32.partialorder %v1134, 0.0
  %vm1261 = vcmp.gt.f32.partialorder %v1139, 0.0
  %vm1262 = vcmp.gt.f32.partialorder %v1144, 0.0
  %vm1263 = vcmp.gt.f32.partialorder %v1149, 0.0
  %vm1264 = vcmp.gt.f32.partialorder %v1154, 0.0
  %vm1265 = vcmp.gt.f32.partialorder %v1159, 0.0
  %vm1266 = vcmp.gt.f32.partialorder %v1164, 0.0
  %vm1267 = vcmp.gt.f32.partialorder %v1169, 0.0
  %vm1268 = vcmp.gt.f32.partialorder %v1174, 0.0
  %vm1269 = vcmp.gt.f32.partialorder %v1179, 0.0
  %vm1270 = vcmp.gt.f32.partialorder %v1184, 0.0
  %vm1271 = vcmp.gt.f32.partialorder %v1189, 0.0
  %vm1272 = vcmp.gt.f32.partialorder %v1194, 0.0
  %vm1273 = vcmp.gt.f32.partialorder %v1199, 0.0
  %vm1274 = vcmp.gt.f32.partialorder %v1204, 0.0
  %vm1275 = vcmp.gt.f32.partialorder %v1209, 0.0
  %vm1276 = vcmp.gt.f32.partialorder %v1214, 0.0
  %vm1277 = vcmp.gt.f32.partialorder %v1219, 0.0
  %vm1278 = vcmp.gt.f32.partialorder %v1224, 0.0
  %vm1279 = vcmp.gt.f32.partialorder %v1229, 0.0
  %vm1280 = vcmp.gt.f32.partialorder %v1234, 0.0
  %vm1281 = vcmp.gt.f32.partialorder %v1239, 0.0
  %vm1282 = vcmp.gt.f32.partialorder %v1244, 0.0
  %vm1283 = vcmp.gt.f32.partialorder %v1249, 0.0
  %v1284 = vmul.f32 %v1094, 0.01
  %v1285 = vmul.f32 %v1099, 0.01
  %v1286 = vmul.f32 %v1104, 0.01
  %v1287 = vmul.f32 %v1109, 0.01
  %v1288 = vmul.f32 %v1114, 0.01
  %v1289 = vmul.f32 %v1119, 0.01
  %v1290 = vmul.f32 %v1124, 0.01
  %v1291 = vmul.f32 %v1129, 0.01
  %v1292 = vmul.f32 %v1134, 0.01
  %v1293 = vmul.f32 %v1139, 0.01
  %v1294 = vmul.f32 %v1144, 0.01
  %v1295 = vmul.f32 %v1149, 0.01
  %v1296 = vmul.f32 %v1154, 0.01
  %v1297 = vmul.f32 %v1159, 0.01
  %v1298 = vmul.f32 %v1164, 0.01
  %v1299 = vmul.f32 %v1169, 0.01
  %v1300 = vmul.f32 %v1174, 0.01
  %v1301 = vmul.f32 %v1179, 0.01
  %v1302 = vmul.f32 %v1184, 0.01
  %v1303 = vmul.f32 %v1189, 0.01
  %v1304 = vmul.f32 %v1194, 0.01
  %v1305 = vmul.f32 %v1199, 0.01
  %v1306 = vmul.f32 %v1204, 0.01
  %v1307 = vmul.f32 %v1209, 0.01
  %v1308 = vmul.f32 %v1214, 0.01
  %v1309 = vmul.f32 %v1219, 0.01
  %v1310 = vmul.f32 %v1224, 0.01
  %v1311 = vmul.f32 %v1229, 0.01
  %v1312 = vmul.f32 %v1234, 0.01
  %v1313 = vmul.f32 %v1239, 0.01
  %v1314 = vmul.f32 %v1244, 0.01
  %v1315 = vmul.f32 %v1249, 0.01
  %v1316 = vsel %vm1252, %v1094, %v1284
  %v1317 = vsel %vm1253, %v1099, %v1285
  %v1318 = vsel %vm1254, %v1104, %v1286
  %v1319 = vsel %vm1255, %v1109, %v1287
  %v1320 = vsel %vm1256, %v1114, %v1288
  %v1321 = vsel %vm1257, %v1119, %v1289
  %v1322 = vsel %vm1258, %v1124, %v1290
  %v1323 = vsel %vm1259, %v1129, %v1291
  %v1324 = vsel %vm1260, %v1134, %v1292
  %v1325 = vsel %vm1261, %v1139, %v1293
  %v1326 = vsel %vm1262, %v1144, %v1294
  %v1327 = vsel %vm1263, %v1149, %v1295
  %v1328 = vsel %vm1264, %v1154, %v1296
  %v1329 = vsel %vm1265, %v1159, %v1297
  %v1330 = vsel %vm1266, %v1164, %v1298
  %v1331 = vsel %vm1267, %v1169, %v1299
  %v1332 = vsel %vm1268, %v1174, %v1300
  %v1333 = vsel %vm1269, %v1179, %v1301
  %v1334 = vsel %vm1270, %v1184, %v1302
  %v1335 = vsel %vm1271, %v1189, %v1303
  %v1336 = vsel %vm1272, %v1194, %v1304
  %v1337 = vsel %vm1273, %v1199, %v1305
  %v1338 = vsel %vm1274, %v1204, %v1306
  %v1339 = vsel %vm1275, %v1209, %v1307
  %v1340 = vsel %vm1276, %v1214, %v1308
  %v1341 = vsel %vm1277, %v1219, %v1309
  %v1342 = vsel %vm1278, %v1224, %v1310
  %v1343 = vsel %vm1279, %v1229, %v1311
  %v1344 = vsel %vm1280, %v1234, %v1312
  %v1345 = vsel %vm1281, %v1239, %v1313
  %v1346 = vsel %vm1282, %v1244, %v1314
  %v1347 = vsel %vm1283, %v1249, %v1315
  %v1348 = vld [vmem:[%s7] sm:$0xff]
  %v1349 = vld [vmem:[%s7 + $0x8] sm:$0xff]
  %v1350 = vld [vmem:[%s7 + $0x10] sm:$0xff]
  %v1351 = vld [vmem:[%s7 + $0x18] sm:$0xff]
  %v1352 = vld [vmem:[%s8] sm:$0x1]
  %v1354 = vlaneseq
  %v1355 = vshrl.u32 %v1354, 7
  %v1356 = vsub.s32 0, %v1355
  %v1357 = vrot.slane %v1352, %v1356
  %v1360 = vsel %vm502, %v1316, 0
  %v1363 = vsel %vm502, %v1317, 0
  %v1366 = vsel %vm502, %v1318, 0
  %v1369 = vsel %vm502, %v1319, 0
  %v1372 = vsel %vm502, %v1320, 0
  %v1375 = vsel %vm502, %v1321, 0
  %v1378 = vsel %vm502, %v1322, 0
  %v1381 = vsel %vm502, %v1323, 0
  %v1384 = vsel %vm502, %v1324, 0
  %v1387 = vsel %vm502, %v1325, 0
  %v1390 = vsel %vm502, %v1326, 0
  %v1393 = vsel %vm502, %v1327, 0
  %v1396 = vsel %vm502, %v1328, 0
  %v1399 = vsel %vm502, %v1329, 0
  %v1402 = vsel %vm502, %v1330, 0
  %v1405 = vsel %vm502, %v1331, 0
  %v1408 = vsel %vm502, %v1332, 0
  %v1411 = vsel %vm502, %v1333, 0
  %v1414 = vsel %vm502, %v1334, 0
  %v1417 = vsel %vm502, %v1335, 0
  %v1420 = vsel %vm502, %v1336, 0
  %v1423 = vsel %vm502, %v1337, 0
  %v1426 = vsel %vm502, %v1338, 0
  %v1429 = vsel %vm502, %v1339, 0
  %v1432 = vsel %vm502, %v1340, 0
  %v1435 = vsel %vm502, %v1341, 0
  %v1438 = vsel %vm502, %v1342, 0
  %v1441 = vsel %vm502, %v1343, 0
  %v1444 = vsel %vm502, %v1344, 0
  %v1447 = vsel %vm502, %v1345, 0
  %v1450 = vsel %vm502, %v1346, 0
  %v1453 = vsel %vm502, %v1347, 0
  %1455 = vmatprep.subr.mxu0 0.0
  %1456 = vmatpush1.msra.mxu0 0.0
  %1457 = vmatprep.subr.mxu0 0.0
  %1458 = vmatpush1.msra.mxu0 0.0
  %1459 = vmatprep.subr.mxu0 0.0
  %1460 = vmatpush1.msra.mxu0 0.0
  %1461 = vmatprep.subr.mxu0 0.0
  %1462 = vmatpush1.msra.mxu0 0.0
  %1463 = vmatprep.subr.mxu0 0.0
  %1464 = vmatpush1.msra.mxu0 0.0
  %1465 = vmatprep.subr.mxu0 0.0
  %1466 = vmatpush1.msra.mxu0 0.0
  %1467 = vmatprep.subr.mxu0 0.0
  %1468 = vmatpush1.msra.mxu0 0.0
  %1469 = vmatprep.subr.mxu0 0.0
  %1470 = vmatpush1.msra.mxu0 0.0
  %1471 = vmatprep.subr.mxu0 0.0
  %1472 = vmatpush1.msra.mxu0 0.0
  %1473 = vmatprep.subr.mxu0 0.0
  %1474 = vmatpush1.msra.mxu0 0.0
  %1475 = vmatprep.subr.mxu0 0.0
  %1476 = vmatpush1.msra.mxu0 0.0
  %1477 = vmatprep.subr.mxu0 0.0
  %1478 = vmatpush1.msra.mxu0 0.0
  %1479 = vmatprep.subr.mxu0 0.0
  %1480 = vmatpush1.msra.mxu0 %v1351
  %1481 = vmatprep.subr.mxu0 0.0
  %1482 = vmatpush1.msra.mxu0 %v1350
  %1483 = vmatprep.subr.mxu0 0.0
  %1484 = vmatpush1.msra.mxu0 %v1349
  %1485 = vmatprep.subr.mxu0 0.0
  %1486 = vmatpush1.msra.mxu0 %v1348
  %1487 = vmatprep.subr.mxu0 0.0
  %1488 = vmatpush2.msra.mxu0 0.0
  %1489 = vmatprep.subr.mxu0 0.0
  %1490 = vmatpush2.msra.mxu0 0.0
  %1491 = vmatprep.subr.mxu0 0.0
  %1492 = vmatpush2.msra.mxu0 0.0
  %1493 = vmatprep.subr.mxu0 0.0
  %1494 = vmatpush2.msra.mxu0 0.0
  %1495 = vmatprep.subr.mxu0 0.0
  %1496 = vmatpush2.msra.mxu0 0.0
  %1497 = vmatprep.subr.mxu0 0.0
  %1498 = vmatpush2.msra.mxu0 0.0
  %1499 = vmatprep.subr.mxu0 0.0
  %1500 = vmatpush2.msra.mxu0 0.0
  %1501 = vmatprep.subr.mxu0 0.0
  %1502 = vmatpush2.msra.mxu0 0.0
  %1503 = vmatprep.subr.mxu0 0.0
  %1504 = vmatpush2.msra.mxu0 0.0
  %1505 = vmatprep.subr.mxu0 0.0
  %1506 = vmatpush2.msra.mxu0 0.0
  %1507 = vmatprep.subr.mxu0 0.0
  %1508 = vmatpush2.msra.mxu0 0.0
  %1509 = vmatprep.subr.mxu0 0.0
  %1510 = vmatpush2.msra.mxu0 0.0
  %1511 = vmatprep.subr.mxu0 0.0
  %1512 = vmatpush2.msra.mxu0 0.0
  %1513 = vmatprep.subr.mxu0 0.0
  %1514 = vmatpush2.msra.mxu0 0.0
  %1515 = vmatprep.subr.mxu0 0.0
  %1516 = vmatpush2.msra.mxu0 0.0
  %1517 = vmatprep.subr.mxu0 0.0
  %1518 = vmatpush2.msra.mxu0 0.0
  %1519 = vmatprep.mubr.f32.mxu0 0.0
  %1520 = vmatmul.mubr.f32.gmra.mxu0 %v1360
  %v1521 = vpop.f32.mrf.mxu0
  %v1522 = vadd.f32 %v1357, %v1521
  %v1523 = vpop.f32.mrf.mxu0
  %1524 = vmatprep.mubr.f32.mxu0 0.0
  %1525 = vmatmul.mubr.f32.gmra.mxu0 %v1363
  %v1526 = vpop.f32.mrf.mxu0
  %v1527 = vadd.f32 %v1357, %v1526
  %v1528 = vpop.f32.mrf.mxu0
  %1529 = vmatprep.mubr.f32.mxu0 0.0
  %1530 = vmatmul.mubr.f32.gmra.mxu0 %v1366
  %v1531 = vpop.f32.mrf.mxu0
  %v1532 = vadd.f32 %v1357, %v1531
  %v1533 = vpop.f32.mrf.mxu0
  %1534 = vmatprep.mubr.f32.mxu0 0.0
  %1535 = vmatmul.mubr.f32.gmra.mxu0 %v1369
  %v1536 = vpop.f32.mrf.mxu0
  %v1537 = vadd.f32 %v1357, %v1536
  %v1538 = vpop.f32.mrf.mxu0
  %1539 = vmatprep.mubr.f32.mxu0 0.0
  %1540 = vmatmul.mubr.f32.gmra.mxu0 %v1372
  %v1541 = vpop.f32.mrf.mxu0
  %v1542 = vadd.f32 %v1357, %v1541
  %v1543 = vpop.f32.mrf.mxu0
  %1544 = vmatprep.mubr.f32.mxu0 0.0
  %1545 = vmatmul.mubr.f32.gmra.mxu0 %v1375
  %v1546 = vpop.f32.mrf.mxu0
  %v1547 = vadd.f32 %v1357, %v1546
  %v1548 = vpop.f32.mrf.mxu0
  %1549 = vmatprep.mubr.f32.mxu0 0.0
  %1550 = vmatmul.mubr.f32.gmra.mxu0 %v1378
  %v1551 = vpop.f32.mrf.mxu0
  %v1552 = vadd.f32 %v1357, %v1551
  %v1553 = vpop.f32.mrf.mxu0
  %1554 = vmatprep.mubr.f32.mxu0 0.0
  %1555 = vmatmul.mubr.f32.gmra.mxu0 %v1381
  %v1556 = vpop.f32.mrf.mxu0
  %v1557 = vadd.f32 %v1357, %v1556
  %v1558 = vpop.f32.mrf.mxu0
  %1559 = vmatprep.mubr.f32.mxu0 0.0
  %1560 = vmatmul.mubr.f32.gmra.mxu0 %v1384
  %v1561 = vpop.f32.mrf.mxu0
  %v1562 = vadd.f32 %v1357, %v1561
  %v1563 = vpop.f32.mrf.mxu0
  %1564 = vmatprep.mubr.f32.mxu0 0.0
  %1565 = vmatmul.mubr.f32.gmra.mxu0 %v1387
  %v1566 = vpop.f32.mrf.mxu0
  %v1567 = vadd.f32 %v1357, %v1566
  %v1568 = vpop.f32.mrf.mxu0
  %1569 = vmatprep.mubr.f32.mxu0 0.0
  %1570 = vmatmul.mubr.f32.gmra.mxu0 %v1390
  %v1571 = vpop.f32.mrf.mxu0
  %v1572 = vadd.f32 %v1357, %v1571
  %v1573 = vpop.f32.mrf.mxu0
  %1574 = vmatprep.mubr.f32.mxu0 0.0
  %1575 = vmatmul.mubr.f32.gmra.mxu0 %v1393
  %v1576 = vpop.f32.mrf.mxu0
  %v1577 = vadd.f32 %v1357, %v1576
  %v1578 = vpop.f32.mrf.mxu0
  %1579 = vmatprep.mubr.f32.mxu0 0.0
  %1580 = vmatmul.mubr.f32.gmra.mxu0 %v1396
  %v1581 = vpop.f32.mrf.mxu0
  %v1582 = vadd.f32 %v1357, %v1581
  %v1583 = vpop.f32.mrf.mxu0
  %1584 = vmatprep.mubr.f32.mxu0 0.0
  %1585 = vmatmul.mubr.f32.gmra.mxu0 %v1399
  %v1586 = vpop.f32.mrf.mxu0
  %v1587 = vadd.f32 %v1357, %v1586
  %v1588 = vpop.f32.mrf.mxu0
  %1589 = vmatprep.mubr.f32.mxu0 0.0
  %1590 = vmatmul.mubr.f32.gmra.mxu0 %v1402
  %v1591 = vpop.f32.mrf.mxu0
  %v1592 = vadd.f32 %v1357, %v1591
  %v1593 = vpop.f32.mrf.mxu0
  %1594 = vmatprep.mubr.f32.mxu0 0.0
  %1595 = vmatmul.mubr.f32.gmra.mxu0 %v1405
  %v1596 = vpop.f32.mrf.mxu0
  %v1597 = vadd.f32 %v1357, %v1596
  %v1598 = vpop.f32.mrf.mxu0
  %1599 = vmatprep.mubr.f32.mxu0 0.0
  %1600 = vmatmul.mubr.f32.gmra.mxu0 %v1408
  %v1601 = vpop.f32.mrf.mxu0
  %v1602 = vadd.f32 %v1357, %v1601
  %v1603 = vpop.f32.mrf.mxu0
  %1604 = vmatprep.mubr.f32.mxu0 0.0
  %1605 = vmatmul.mubr.f32.gmra.mxu0 %v1411
  %v1606 = vpop.f32.mrf.mxu0
  %v1607 = vadd.f32 %v1357, %v1606
  %v1608 = vpop.f32.mrf.mxu0
  %1609 = vmatprep.mubr.f32.mxu0 0.0
  %1610 = vmatmul.mubr.f32.gmra.mxu0 %v1414
  %v1611 = vpop.f32.mrf.mxu0
  %v1612 = vadd.f32 %v1357, %v1611
  %v1613 = vpop.f32.mrf.mxu0
  %1614 = vmatprep.mubr.f32.mxu0 0.0
  %1615 = vmatmul.mubr.f32.gmra.mxu0 %v1417
  %v1616 = vpop.f32.mrf.mxu0
  %v1617 = vadd.f32 %v1357, %v1616
  %v1618 = vpop.f32.mrf.mxu0
  %1619 = vmatprep.mubr.f32.mxu0 0.0
  %1620 = vmatmul.mubr.f32.gmra.mxu0 %v1420
  %v1621 = vpop.f32.mrf.mxu0
  %v1622 = vadd.f32 %v1357, %v1621
  %v1623 = vpop.f32.mrf.mxu0
  %1624 = vmatprep.mubr.f32.mxu0 0.0
  %1625 = vmatmul.mubr.f32.gmra.mxu0 %v1423
  %v1626 = vpop.f32.mrf.mxu0
  %v1627 = vadd.f32 %v1357, %v1626
  %v1628 = vpop.f32.mrf.mxu0
  %1629 = vmatprep.mubr.f32.mxu0 0.0
  %1630 = vmatmul.mubr.f32.gmra.mxu0 %v1426
  %v1631 = vpop.f32.mrf.mxu0
  %v1632 = vadd.f32 %v1357, %v1631
  %v1633 = vpop.f32.mrf.mxu0
  %1634 = vmatprep.mubr.f32.mxu0 0.0
  %1635 = vmatmul.mubr.f32.gmra.mxu0 %v1429
  %v1636 = vpop.f32.mrf.mxu0
  %v1637 = vadd.f32 %v1357, %v1636
  %v1638 = vpop.f32.mrf.mxu0
  %1639 = vmatprep.mubr.f32.mxu0 0.0
  %1640 = vmatmul.mubr.f32.gmra.mxu0 %v1432
  %v1641 = vpop.f32.mrf.mxu0
  %v1642 = vadd.f32 %v1357, %v1641
  %v1643 = vpop.f32.mrf.mxu0
  %1644 = vmatprep.mubr.f32.mxu0 0.0
  %1645 = vmatmul.mubr.f32.gmra.mxu0 %v1435
  %v1646 = vpop.f32.mrf.mxu0
  %v1647 = vadd.f32 %v1357, %v1646
  %v1648 = vpop.f32.mrf.mxu0
  %1649 = vmatprep.mubr.f32.mxu0 0.0
  %1650 = vmatmul.mubr.f32.gmra.mxu0 %v1438
  %v1651 = vpop.f32.mrf.mxu0
  %v1652 = vadd.f32 %v1357, %v1651
  %v1653 = vpop.f32.mrf.mxu0
  %1654 = vmatprep.mubr.f32.mxu0 0.0
  %1655 = vmatmul.mubr.f32.gmra.mxu0 %v1441
  %v1656 = vpop.f32.mrf.mxu0
  %v1657 = vadd.f32 %v1357, %v1656
  %v1658 = vpop.f32.mrf.mxu0
  %1659 = vmatprep.mubr.f32.mxu0 0.0
  %1660 = vmatmul.mubr.f32.gmra.mxu0 %v1444
  %v1661 = vpop.f32.mrf.mxu0
  %v1662 = vadd.f32 %v1357, %v1661
  %v1663 = vpop.f32.mrf.mxu0
  %1664 = vmatprep.mubr.f32.mxu0 0.0
  %1665 = vmatmul.mubr.f32.gmra.mxu0 %v1447
  %v1666 = vpop.f32.mrf.mxu0
  %v1667 = vadd.f32 %v1357, %v1666
  %v1668 = vpop.f32.mrf.mxu0
  %1669 = vmatprep.mubr.f32.mxu0 0.0
  %1670 = vmatmul.mubr.f32.gmra.mxu0 %v1450
  %v1671 = vpop.f32.mrf.mxu0
  %v1672 = vadd.f32 %v1357, %v1671
  %v1673 = vpop.f32.mrf.mxu0
  %1674 = vmatprep.mubr.f32.mxu0 0.0
  %1675 = vmatmul.mubr.f32.gmra.mxu0 %v1453
  %v1676 = vpop.f32.mrf.mxu0
  %v1677 = vadd.f32 %v1357, %v1676
  %v1678 = vpop.f32.mrf.mxu0
  %1679 = vdwg.mxu0
  %v1680 = vsub.f32 0.0, %v1522
  %v1681 = vsub.f32 0.0, %v1527
  %v1682 = vsub.f32 0.0, %v1532
  %v1683 = vsub.f32 0.0, %v1537
  %v1684 = vsub.f32 0.0, %v1542
  %v1685 = vsub.f32 0.0, %v1547
  %v1686 = vsub.f32 0.0, %v1552
  %v1687 = vsub.f32 0.0, %v1557
  %v1688 = vsub.f32 0.0, %v1562
  %v1689 = vsub.f32 0.0, %v1567
  %v1690 = vsub.f32 0.0, %v1572
  %v1691 = vsub.f32 0.0, %v1577
  %v1692 = vsub.f32 0.0, %v1582
  %v1693 = vsub.f32 0.0, %v1587
  %v1694 = vsub.f32 0.0, %v1592
  %v1695 = vsub.f32 0.0, %v1597
  %v1696 = vsub.f32 0.0, %v1602
  %v1697 = vsub.f32 0.0, %v1607
  %v1698 = vsub.f32 0.0, %v1612
  %v1699 = vsub.f32 0.0, %v1617
  %v1700 = vsub.f32 0.0, %v1622
  %v1701 = vsub.f32 0.0, %v1627
  %v1702 = vsub.f32 0.0, %v1632
  %v1703 = vsub.f32 0.0, %v1637
  %v1704 = vsub.f32 0.0, %v1642
  %v1705 = vsub.f32 0.0, %v1647
  %v1706 = vsub.f32 0.0, %v1652
  %v1707 = vsub.f32 0.0, %v1657
  %v1708 = vsub.f32 0.0, %v1662
  %v1709 = vsub.f32 0.0, %v1667
  %v1710 = vsub.f32 0.0, %v1672
  %v1711 = vsub.f32 0.0, %v1677
  %v1712 = vmul.f32 %v1680, 1.442695
  %v1713 = vpow.pop %v1712
  %v1714 = vmul.f32 %v1681, 1.442695
  %v1715 = vpow.pop %v1714
  %v1716 = vmul.f32 %v1682, 1.442695
  %v1717 = vpow.pop %v1716
  %v1718 = vmul.f32 %v1683, 1.442695
  %v1719 = vpow.pop %v1718
  %v1720 = vmul.f32 %v1684, 1.442695
  %v1721 = vpow.pop %v1720
  %v1722 = vmul.f32 %v1685, 1.442695
  %v1723 = vpow.pop %v1722
  %v1724 = vmul.f32 %v1686, 1.442695
  %v1725 = vpow.pop %v1724
  %v1726 = vmul.f32 %v1687, 1.442695
  %v1727 = vpow.pop %v1726
  %v1728 = vmul.f32 %v1688, 1.442695
  %v1729 = vpow.pop %v1728
  %v1730 = vmul.f32 %v1689, 1.442695
  %v1731 = vpow.pop %v1730
  %v1732 = vmul.f32 %v1690, 1.442695
  %v1733 = vpow.pop %v1732
  %v1734 = vmul.f32 %v1691, 1.442695
  %v1735 = vpow.pop %v1734
  %v1736 = vmul.f32 %v1692, 1.442695
  %v1737 = vpow.pop %v1736
  %v1738 = vmul.f32 %v1693, 1.442695
  %v1739 = vpow.pop %v1738
  %v1740 = vmul.f32 %v1694, 1.442695
  %v1741 = vpow.pop %v1740
  %v1742 = vmul.f32 %v1695, 1.442695
  %v1743 = vpow.pop %v1742
  %v1744 = vmul.f32 %v1696, 1.442695
  %v1745 = vpow.pop %v1744
  %v1746 = vmul.f32 %v1697, 1.442695
  %v1747 = vpow.pop %v1746
  %v1748 = vmul.f32 %v1698, 1.442695
  %v1749 = vpow.pop %v1748
  %v1750 = vmul.f32 %v1699, 1.442695
  %v1751 = vpow.pop %v1750
  %v1752 = vmul.f32 %v1700, 1.442695
  %v1753 = vpow.pop %v1752
  %v1754 = vmul.f32 %v1701, 1.442695
  %v1755 = vpow.pop %v1754
  %v1756 = vmul.f32 %v1702, 1.442695
  %v1757 = vpow.pop %v1756
  %v1758 = vmul.f32 %v1703, 1.442695
  %v1759 = vpow.pop %v1758
  %v1760 = vmul.f32 %v1704, 1.442695
  %v1761 = vpow.pop %v1760
  %v1762 = vmul.f32 %v1705, 1.442695
  %v1763 = vpow.pop %v1762
  %v1764 = vmul.f32 %v1706, 1.442695
  %v1765 = vpow.pop %v1764
  %v1766 = vmul.f32 %v1707, 1.442695
  %v1767 = vpow.pop %v1766
  %v1768 = vmul.f32 %v1708, 1.442695
  %v1769 = vpow.pop %v1768
  %v1770 = vmul.f32 %v1709, 1.442695
  %v1771 = vpow.pop %v1770
  %v1772 = vmul.f32 %v1710, 1.442695
  %v1773 = vpow.pop %v1772
  %v1774 = vmul.f32 %v1711, 1.442695
  %v1775 = vpow.pop %v1774
  %v1776 = vadd.f32 %v1713, 1.0
  %v1777 = vadd.f32 %v1715, 1.0
  %v1778 = vadd.f32 %v1717, 1.0
  %v1779 = vadd.f32 %v1719, 1.0
  %v1780 = vadd.f32 %v1721, 1.0
  %v1781 = vadd.f32 %v1723, 1.0
  %v1782 = vadd.f32 %v1725, 1.0
  %v1783 = vadd.f32 %v1727, 1.0
  %v1784 = vadd.f32 %v1729, 1.0
  %v1785 = vadd.f32 %v1731, 1.0
  %v1786 = vadd.f32 %v1733, 1.0
  %v1787 = vadd.f32 %v1735, 1.0
  %v1788 = vadd.f32 %v1737, 1.0
  %v1789 = vadd.f32 %v1739, 1.0
  %v1790 = vadd.f32 %v1741, 1.0
  %v1791 = vadd.f32 %v1743, 1.0
  %v1792 = vadd.f32 %v1745, 1.0
  %v1793 = vadd.f32 %v1747, 1.0
  %v1794 = vadd.f32 %v1749, 1.0
  %v1795 = vadd.f32 %v1751, 1.0
  %v1796 = vadd.f32 %v1753, 1.0
  %v1797 = vadd.f32 %v1755, 1.0
  %v1798 = vadd.f32 %v1757, 1.0
  %v1799 = vadd.f32 %v1759, 1.0
  %v1800 = vadd.f32 %v1761, 1.0
  %v1801 = vadd.f32 %v1763, 1.0
  %v1802 = vadd.f32 %v1765, 1.0
  %v1803 = vadd.f32 %v1767, 1.0
  %v1804 = vadd.f32 %v1769, 1.0
  %v1805 = vadd.f32 %v1771, 1.0
  %v1806 = vadd.f32 %v1773, 1.0
  %v1807 = vadd.f32 %v1775, 1.0
  %v1808 = vrcp.pop %v1776
  %v1809 = vmul.f32 1.0, %v1808
  %v1810 = vrcp.pop %v1777
  %v1811 = vmul.f32 1.0, %v1810
  %v1812 = vrcp.pop %v1778
  %v1813 = vmul.f32 1.0, %v1812
  %v1814 = vrcp.pop %v1779
  %v1815 = vmul.f32 1.0, %v1814
  %v1816 = vrcp.pop %v1780
  %v1817 = vmul.f32 1.0, %v1816
  %v1818 = vrcp.pop %v1781
  %v1819 = vmul.f32 1.0, %v1818
  %v1820 = vrcp.pop %v1782
  %v1821 = vmul.f32 1.0, %v1820
  %v1822 = vrcp.pop %v1783
  %v1823 = vmul.f32 1.0, %v1822
  %v1824 = vrcp.pop %v1784
  %v1825 = vmul.f32 1.0, %v1824
  %v1826 = vrcp.pop %v1785
  %v1827 = vmul.f32 1.0, %v1826
  %v1828 = vrcp.pop %v1786
  %v1829 = vmul.f32 1.0, %v1828
  %v1830 = vrcp.pop %v1787
  %v1831 = vmul.f32 1.0, %v1830
  %v1832 = vrcp.pop %v1788
  %v1833 = vmul.f32 1.0, %v1832
  %v1834 = vrcp.pop %v1789
  %v1835 = vmul.f32 1.0, %v1834
  %v1836 = vrcp.pop %v1790
  %v1837 = vmul.f32 1.0, %v1836
  %v1838 = vrcp.pop %v1791
  %v1839 = vmul.f32 1.0, %v1838
  %v1840 = vrcp.pop %v1792
  %v1841 = vmul.f32 1.0, %v1840
  %v1842 = vrcp.pop %v1793
  %v1843 = vmul.f32 1.0, %v1842
  %v1844 = vrcp.pop %v1794
  %v1845 = vmul.f32 1.0, %v1844
  %v1846 = vrcp.pop %v1795
  %v1847 = vmul.f32 1.0, %v1846
  %v1848 = vrcp.pop %v1796
  %v1849 = vmul.f32 1.0, %v1848
  %v1850 = vrcp.pop %v1797
  %v1851 = vmul.f32 1.0, %v1850
  %v1852 = vrcp.pop %v1798
  %v1853 = vmul.f32 1.0, %v1852
  %v1854 = vrcp.pop %v1799
  %v1855 = vmul.f32 1.0, %v1854
  %v1856 = vrcp.pop %v1800
  %v1857 = vmul.f32 1.0, %v1856
  %v1858 = vrcp.pop %v1801
  %v1859 = vmul.f32 1.0, %v1858
  %v1860 = vrcp.pop %v1802
  %v1861 = vmul.f32 1.0, %v1860
  %v1862 = vrcp.pop %v1803
  %v1863 = vmul.f32 1.0, %v1862
  %v1864 = vrcp.pop %v1804
  %v1865 = vmul.f32 1.0, %v1864
  %v1866 = vrcp.pop %v1805
  %v1867 = vmul.f32 1.0, %v1866
  %v1868 = vrcp.pop %v1806
  %v1869 = vmul.f32 1.0, %v1868
  %v1870 = vrcp.pop %v1807
  %v1871 = vmul.f32 1.0, %v1870
  %vm1872 = vcmask 31744
  %1873 = vst.msk [vmem:[%s9] sm:$0xff] %vm1872, %v1809
  %1874 = vst.msk [vmem:[%s9 + $0x8] sm:$0xff] %vm1872, %v1811
  %1875 = vst.msk [vmem:[%s9 + $0x10] sm:$0xff] %vm1872, %v1813
  %1876 = vst.msk [vmem:[%s9 + $0x18] sm:$0xff] %vm1872, %v1815
  %1877 = vst.msk [vmem:[%s9 + $0x20] sm:$0xff] %vm1872, %v1817
  %1878 = vst.msk [vmem:[%s9 + $0x28] sm:$0xff] %vm1872, %v1819
  %1879 = vst.msk [vmem:[%s9 + $0x30] sm:$0xff] %vm1872, %v1821
  %1880 = vst.msk [vmem:[%s9 + $0x38] sm:$0xff] %vm1872, %v1823
  %1881 = vst.msk [vmem:[%s9 + $0x40] sm:$0xff] %vm1872, %v1825
  %1882 = vst.msk [vmem:[%s9 + $0x48] sm:$0xff] %vm1872, %v1827
  %1883 = vst.msk [vmem:[%s9 + $0x50] sm:$0xff] %vm1872, %v1829
  %1884 = vst.msk [vmem:[%s9 + $0x58] sm:$0xff] %vm1872, %v1831
  %1885 = vst.msk [vmem:[%s9 + $0x60] sm:$0xff] %vm1872, %v1833
  %1886 = vst.msk [vmem:[%s9 + $0x68] sm:$0xff] %vm1872, %v1835
  %1887 = vst.msk [vmem:[%s9 + $0x70] sm:$0xff] %vm1872, %v1837
  %1888 = vst.msk [vmem:[%s9 + $0x78] sm:$0xff] %vm1872, %v1839
  %1889 = vst.msk [vmem:[%s9 + $0x80] sm:$0xff] %vm1872, %v1841
  %1890 = vst.msk [vmem:[%s9 + $0x88] sm:$0xff] %vm1872, %v1843
  %1891 = vst.msk [vmem:[%s9 + $0x90] sm:$0xff] %vm1872, %v1845
  %1892 = vst.msk [vmem:[%s9 + $0x98] sm:$0xff] %vm1872, %v1847
  %1893 = vst.msk [vmem:[%s9 + $0xa0] sm:$0xff] %vm1872, %v1849
  %1894 = vst.msk [vmem:[%s9 + $0xa8] sm:$0xff] %vm1872, %v1851
  %1895 = vst.msk [vmem:[%s9 + $0xb0] sm:$0xff] %vm1872, %v1853
  %1896 = vst.msk [vmem:[%s9 + $0xb8] sm:$0xff] %vm1872, %v1855
  %1897 = vst.msk [vmem:[%s9 + $0xc0] sm:$0xff] %vm1872, %v1857
  %1898 = vst.msk [vmem:[%s9 + $0xc8] sm:$0xff] %vm1872, %v1859
  %1899 = vst.msk [vmem:[%s9 + $0xd0] sm:$0xff] %vm1872, %v1861
  %1900 = vst.msk [vmem:[%s9 + $0xd8] sm:$0xff] %vm1872, %v1863
  %1901 = vst.msk [vmem:[%s9 + $0xe0] sm:$0xff] %vm1872, %v1865
  %1902 = vst.msk [vmem:[%s9 + $0xe8] sm:$0xff] %vm1872, %v1867
  %1903 = vst.msk [vmem:[%s9 + $0xf0] sm:$0xff] %vm1872, %v1869
  %1904 = vst.msk [vmem:[%s9 + $0xf8] sm:$0xff] %vm1872, %v1871
  // Predicated region
  $region38: #{tpu_custom_call.1} parent=0 // pred_check
    _
  $region39: #{tpu_custom_call.1} parent=0 // pred_check_branch
    %1906 = sbr.rel (0) target = $region41
  $region40: #{tpu_custom_call.1} parent=0 // pred_region
    _
  $region41: #{tpu_custom_call.1} parent=0 // pred_fallthru
    _
  // Predicated region
  $region42: #{tpu_custom_call.1} parent=0 // pred_check
    _
  $region43: #{tpu_custom_call.1} parent=0 // pred_check_branch
    %1908 = sbr.rel (0) target = $region45
  $region44: #{tpu_custom_call.1} parent=0 // pred_region
    _
  $region45: #{tpu_custom_call.1} parent=0 // pred_fallthru
    _

</llo_original>
